<compile_context>
chip_gen: v5e
topology: v5e:2x2
jax: 0.10.0
libtpu: 0.0.40
codegen_flags: <defaults>
</compile_context>

<pallas_src>
import functools

import jax
import jax.numpy as jnp
from jax.experimental import pallas as pl
from jax.experimental.pallas import tpu as pltpu


def _round_up(x, m):
    return ((x + m - 1) // m) * m


def _plan(n):
    """Padded node count plus (tm, tk) tiles that divide it evenly.

    tm: output row tile, n_pad//2 .. 512 -> always >= 2 programs on the
        parallel row axis (keeps both v7x TensorCores busy).
    tk: reduction tile, whole reduction for small graphs, 1-2K otherwise so
        the bf16 A tile is 1-2 MiB (per-step overhead amortized, contiguous
        DMA rows of 2-4 KiB).
    """
    if n <= 1024:
        n_pad = _round_up(n, 256)
        tm = max(128, n_pad // 2)
        tk = n_pad                       # whole reduction in one K step
    else:
        n_pad = _round_up(n, 1024)
        tm = 512
        tk = 2048 if n_pad % 2048 == 0 else 1024
    return n_pad, tm, tk


def _agg_kernel(a_ref, h_ref, o_ref, acc_ref):
    """acc[i,:] += A[i-tile, k-tile] @ H[k-slab, :];  store on last K step."""
    k = pl.program_id(1)
    tk = a_ref.shape[1]

    @pl.when(k == 0)
    def _():
        acc_ref[...] = jnp.zeros_like(acc_ref)

    start = pl.multiple_of(k * tk, tk)
    h_blk = h_ref[pl.ds(start, tk), :]                 # slab of resident H
    acc_ref[...] += jnp.dot(a_ref[...], h_blk,          # bf16 x bf16 -> f32 acc
                            preferred_element_type=jnp.float32)

    @pl.when(k == pl.num_programs(1) - 1)
    def _():
        o_ref[...] = acc_ref[...].astype(o_ref.dtype)


def _agg_project_kernel(a_ref, h_ref, w2_ref, o_ref, acc_ref):
    """Same as _agg_kernel, but project the accumulator by W2 as an epilogue."""
    k = pl.program_id(1)
    tk = a_ref.shape[1]

    @pl.when(k == 0)
    def _():
        acc_ref[...] = jnp.zeros_like(acc_ref)

    start = pl.multiple_of(k * tk, tk)
    h_blk = h_ref[pl.ds(start, tk), :]
    acc_ref[...] += jnp.dot(a_ref[...], h_blk,
                            preferred_element_type=jnp.float32)

    @pl.when(k == pl.num_programs(1) - 1)
    def _():
        # Tiny (tm,128)@(128,128) epilogue, once per row tile / K sweep.
        o_ref[...] = jnp.dot(acc_ref[...], w2_ref[...],
                             preferred_element_type=jnp.float32
                             ).astype(o_ref.dtype)


def _aggregate(adj_bf16, h_bf16, w2=None, *, tm, tk, out_dtype):
    """Pallas aggregation:  A @ H, optionally fused with a trailing @ W2."""
    n_pad = adj_bf16.shape[0]
    width = h_bf16.shape[1]                  # lane-dense padded channel width
    grid = (n_pad // tm, n_pad // tk)        # (row tiles, reduction tiles)

    in_specs = [
        pl.BlockSpec((tm, tk), lambda i, k: (i, k)),        # A tile (bf16)
        pl.BlockSpec((n_pad, width), lambda i, k: (0, 0)),  # H resident (bf16)
    ]
    operands = [adj_bf16, h_bf16]
    kernel = _agg_kernel
    if w2 is not None:
        in_specs.append(pl.BlockSpec(w2.shape, lambda i, k: (0, 0)))
        operands.append(w2)
        kernel = _agg_project_kernel

    return pl.pallas_call(
        kernel,
        out_shape=jax.ShapeDtypeStruct((n_pad, width), out_dtype),
        grid_spec=pltpu.PrefetchScalarGridSpec(
            num_scalar_prefetch=0,
            grid=grid,
            in_specs=in_specs,
            out_specs=pl.BlockSpec((tm, width), lambda i, k: (i, 0)),
            scratch_shapes=[pltpu.VMEM((tm, width), jnp.float32)],
        ),
        compiler_params=pltpu.CompilerParams(
            dimension_semantics=("parallel", "arbitrary"),
            vmem_limit_bytes=32 * 1024 * 1024),
    )(*operands)


@functools.partial(jax.jit, static_argnames=("tm", "tk"))
def gcn_net_forward(x, adj_pad_bf16, w1, w2, *, tm, tk):
    """Net.forward(): two stacked GCNConv layers (normalize=False, bias=False).

    `adj_pad_bf16` is the already-padded bf16 dense adjacency (built once,
    outside the hot path).
    """
    n, f = x.shape
    n_pad = adj_pad_bf16.shape[0]
    hidden = w1.shape[1]
    n_classes = w2.shape[1]
    # Common lane-dense channel width so the W2 epilogue projects the resident
    # accumulator in place (hidden- and class-padding share the 128 lanes).
    width = max(_round_up(hidden, 128), _round_up(n_classes, 128))

    # Zero-padding contributes exact zeros -> math unchanged.
    w1p = jnp.zeros((f, width), jnp.float32).at[:, :hidden].set(w1)
    w2p = jnp.zeros((width, width), jnp.float32).at[:hidden, :n_classes].set(w2)
    xp = jnp.pad(x.astype(jnp.float32), ((0, n_pad - n), (0, 0)))

    h1 = jnp.dot(xp, w1p, preferred_element_type=jnp.float32)     # X @ W1 (tiny)
    h1 = h1.astype(jnp.bfloat16)                                   # bf16 MXU feed
    h2 = _aggregate(adj_pad_bf16, h1, w2p, tm=tm, tk=tk,
                    out_dtype=jnp.bfloat16)                        # (A @ H1) @ W2
    out = _aggregate(adj_pad_bf16, h2, None, tm=tm, tk=tk,
                     out_dtype=jnp.float32)                        # A @ H2
    return out[:n, :n_classes]


def build_padded_adjacency(edge_index, num_nodes, n_pad):
    """A[dst, src] += 1 per edge (sum aggregation, source_to_target flow).

    Built in f32 and cast to bf16 (exact for edge-multiplicity counts <= 256),
    already zero-padded to n_pad so the hot forward path never pads/casts the
    O(N^2) operand.
    """
    # TODO(synk): for graphs much larger than Planetoid, replace the dense
    # O(N^2) adjacency with a blocked-sparse / scalar-prefetch gather kernel.
    src, dst = edge_index[0], edge_index[1]
    adj = jnp.zeros((n_pad, n_pad), dtype=jnp.float32)
    adj = adj.at[dst, src].add(1.0)
    return adj.astype(jnp.bfloat16)


if __name__ == "__main__":
    # Small synthetic "Planetoid-like" graph (deterministic; N not a multiple
    # of 128 to exercise the padding path).
    NUM_NODES = 300
    NUM_FEATURES = 64
    HIDDEN = 16          # conv1 out channels (fixed at 16 in the module)
    NUM_CLASSES = 7
    NUM_EDGES = 1500

    key = jax.random.PRNGKey(0)
    k_x, k_e, k_w1, k_w2 = jax.random.split(key, 4)

    # Node features (NormalizeFeatures: rows sum to 1).
    x = jax.random.uniform(k_x, (NUM_NODES, NUM_FEATURES), dtype=jnp.float32)
    x = x / jnp.sum(x, axis=1, keepdims=True)

    # Random edge_index [2, E].
    edge_index = jax.random.randint(k_e, (2, NUM_EDGES), 0, NUM_NODES,
                                    dtype=jnp.int32)

    # Deterministic GCN weights (weight1: [F, 16], weight2: [16, C]).
    weight1 = (jax.random.normal(k_w1, (NUM_FEATURES, HIDDEN),
                                 dtype=jnp.float32) * 0.1)
    weight2 = (jax.random.normal(k_w2, (HIDDEN, NUM_CLASSES),
                                 dtype=jnp.float32) * 0.1)

    n_pad, tm, tk = _plan(NUM_NODES)
    adjp = build_padded_adjacency(edge_index, NUM_NODES, n_pad)   # hoisted

    out = gcn_net_forward(x, adjp, weight1, weight2, tm=tm, tk=tk)
    out = jax.block_until_ready(out)

    # Pure-JAX f32 reference of the same forward pass.  The kernel path keeps
    # A exact in bf16 but carries H1/H2 in bf16, so compare with a bf16-level
    # tolerance (~0.5% relative).
    adj_f32 = adjp.astype(jnp.float32)[:NUM_NODES, :NUM_NODES]
    ref = adj_f32 @ ((adj_f32 @ (x @ weight1)) @ weight2)
    assert out.shape == (NUM_NODES, NUM_CLASSES), out.shape
    scale = float(jnp.max(jnp.abs(ref))) + 1e-12
    rel_err = float(jnp.max(jnp.abs(out - ref))) / scale
    assert rel_err < 2e-2, f"mismatch vs reference: rel err {rel_err}"

    print("KERNEL_OK")
</pallas_src>

<mosaic_0001>
module attributes {stable_mosaic.version = 11 : i64} {
  func.func @_agg_project_kernel(%arg0: i32, %arg1: i32, %arg2: memref<256x512xbf16, #tpu.memory_space<vmem>>, %arg3: memref<512x128xbf16, #tpu.memory_space<vmem>>, %arg4: memref<128x128xf32, #tpu.memory_space<vmem>>, %arg5: memref<256x128xbf16, #tpu.memory_space<vmem>>, %arg6: memref<256x128xf32, #tpu.memory_space<vmem>>) attributes {dimension_semantics = [#tpu.dimension_semantics<parallel>, #tpu.dimension_semantics<arbitrary>], iteration_bounds = array<i64: 2, 1>, scalar_prefetch = 0 : i64, scratch_operands = 1 : i64, tpu.core_type = #tpu.core_type<tc>, window_params = [{transform_indices = @transform_0, window_bounds = array<i64: 256, 512>}, {pipeline_mode = #tpu.pipeline_mode<synchronous>, transform_indices = @transform_1, window_bounds = array<i64: 512, 128>}, {pipeline_mode = #tpu.pipeline_mode<synchronous>, transform_indices = @transform_2, window_bounds = array<i64: 128, 128>}, {transform_indices = @transform_3, window_bounds = array<i64: 256, 128>}]} {
    %c0_i32 = arith.constant 0 : i32
    %0 = arith.cmpi eq, %arg1, %c0_i32 : i32
    %1 = arith.extui %0 : i1 to i32
    %c0_i32_0 = arith.constant 0 : i32
    %2 = arith.cmpi ne, %1, %c0_i32_0 : i32
    scf.if %2 {
      %cst_9 = arith.constant 0.000000e+00 : f32
      %15 = vector.broadcast %cst_9 : f32 to vector<256x128xf32>
      %c0_10 = arith.constant 0 : index
      %c0_11 = arith.constant 0 : index
      %16 = vector.load %arg6[%c0_10, %c0_11] : memref<256x128xf32, #tpu.memory_space<vmem>>, vector<256x128xf32>
      tpu.vector_store %arg6[%c0_10, %c0_11], %15 {strides = array<i32>} : memref<256x128xf32, #tpu.memory_space<vmem>>, vector<256x128xf32>,
    } else {
    }
    %c512_i32 = arith.constant 512 : i32
    %3 = arith.muli %arg1, %c512_i32 : i32
    %4 = tpu.assume_multiple %3, 512 : i32
    %5 = arith.index_cast %4 : i32 to index
    %c0 = arith.constant 0 : index
    %6 = vector.load %arg3[%5, %c0] : memref<512x128xbf16, #tpu.memory_space<vmem>>, vector<512x128xbf16>
    %c0_1 = arith.constant 0 : index
    %c0_2 = arith.constant 0 : index
    %7 = vector.load %arg6[%c0_1, %c0_2] : memref<256x128xf32, #tpu.memory_space<vmem>>, vector<256x128xf32>
    %c0_3 = arith.constant 0 : index
    %c0_4 = arith.constant 0 : index
    %8 = vector.load %arg2[%c0_3, %c0_4] : memref<256x512xbf16, #tpu.memory_space<vmem>>, vector<256x512xbf16>
    %cst = arith.constant dense<0.000000e+00> : vector<256x128xf32>
    %9 = tpu.matmul %8, %6, %cst {dimension_numbers = #tpu.dot_dimension_numbers<[1], [0], [0], [1], [0, 0, 1, 1], [], []>} : vector<256x512xbf16>, vector<512x128xbf16>, vector<256x128xf32> -> vector<256x128xf32>
    %10 = arith.addf %7, %9 : vector<256x128xf32>
    %c0_5 = arith.constant 0 : index
    %c0_6 = arith.constant 0 : index
    %11 = vector.load %arg6[%c0_5, %c0_6] : memref<256x128xf32, #tpu.memory_space<vmem>>, vector<256x128xf32>
    tpu.vector_store %arg6[%c0_5, %c0_6], %10 {strides = array<i32>} : memref<256x128xf32, #tpu.memory_space<vmem>>, vector<256x128xf32>,
    %c0_i32_7 = arith.constant 0 : i32
    %12 = arith.cmpi eq, %arg1, %c0_i32_7 : i32
    %13 = arith.extui %12 : i1 to i32
    %c0_i32_8 = arith.constant 0 : i32
    %14 = arith.cmpi ne, %13, %c0_i32_8 : i32
    scf.if %14 {
      %c0_9 = arith.constant 0 : index
      %c0_10 = arith.constant 0 : index
      %15 = vector.load %arg6[%c0_9, %c0_10] : memref<256x128xf32, #tpu.memory_space<vmem>>, vector<256x128xf32>
      %c0_11 = arith.constant 0 : index
      %c0_12 = arith.constant 0 : index
      %16 = vector.load %arg4[%c0_11, %c0_12] : memref<128x128xf32, #tpu.memory_space<vmem>>, vector<128x128xf32>
      %cst_13 = arith.constant dense<0.000000e+00> : vector<256x128xf32>
      %17 = tpu.matmul %15, %16, %cst_13 {dimension_numbers = #tpu.dot_dimension_numbers<[1], [0], [0], [1], [0, 0, 1, 1], [], []>} : vector<256x128xf32>, vector<128x128xf32>, vector<256x128xf32> -> vector<256x128xf32>
      %18 = arith.truncf %17 : vector<256x128xf32> to vector<256x128xbf16>
      %c0_14 = arith.constant 0 : index
      %c0_15 = arith.constant 0 : index
      %19 = vector.load %arg5[%c0_14, %c0_15] : memref<256x128xbf16, #tpu.memory_space<vmem>>, vector<256x128xbf16>
      tpu.vector_store %arg5[%c0_14, %c0_15], %18 {strides = array<i32>} : memref<256x128xbf16, #tpu.memory_space<vmem>>, vector<256x128xbf16>,
    } else {
    }
    return
  }
  func.func @transform_0(%arg0: i32, %arg1: i32) -> (i32, i32) {
    %c0_i32 = arith.constant 0 : i32
    return %arg0, %arg1 : i32, i32
  }
  func.func @transform_1(%arg0: i32, %arg1: i32) -> (i32, i32) {
    %c0_i32 = arith.constant 0 : i32
    %c0_i32_0 = arith.constant 0 : i32
    %c0_i32_1 = arith.constant 0 : i32
    return %c0_i32, %c0_i32_0 : i32, i32
  }
  func.func @transform_2(%arg0: i32, %arg1: i32) -> (i32, i32) {
    %c0_i32 = arith.constant 0 : i32
    %c0_i32_0 = arith.constant 0 : i32
    %c0_i32_1 = arith.constant 0 : i32
    return %c0_i32, %c0_i32_0 : i32, i32
  }
  func.func @transform_3(%arg0: i32, %arg1: i32) -> (i32, i32) {
    %c0_i32 = arith.constant 0 : i32
    %c0_i32_0 = arith.constant 0 : i32
    return %arg0, %c0_i32 : i32, i32
  }
}

module attributes {stable_mosaic.version = 11 : i64} {
  func.func @_agg_kernel(%arg0: i32, %arg1: i32, %arg2: memref<256x512xbf16, #tpu.memory_space<vmem>>, %arg3: memref<512x128xbf16, #tpu.memory_space<vmem>>, %arg4: memref<256x128xf32, #tpu.memory_space<vmem>>, %arg5: memref<256x128xf32, #tpu.memory_space<vmem>>) attributes {dimension_semantics = [#tpu.dimension_semantics<parallel>, #tpu.dimension_semantics<arbitrary>], iteration_bounds = array<i64: 2, 1>, scalar_prefetch = 0 : i64, scratch_operands = 1 : i64, tpu.core_type = #tpu.core_type<tc>, window_params = [{transform_indices = @transform_0, window_bounds = array<i64: 256, 512>}, {pipeline_mode = #tpu.pipeline_mode<synchronous>, transform_indices = @transform_1, window_bounds = array<i64: 512, 128>}, {transform_indices = @transform_2, window_bounds = array<i64: 256, 128>}]} {
    %c0_i32 = arith.constant 0 : i32
    %0 = arith.cmpi eq, %arg1, %c0_i32 : i32
    %1 = arith.extui %0 : i1 to i32
    %c0_i32_0 = arith.constant 0 : i32
    %2 = arith.cmpi ne, %1, %c0_i32_0 : i32
    scf.if %2 {
      %cst_9 = arith.constant 0.000000e+00 : f32
      %15 = vector.broadcast %cst_9 : f32 to vector<256x128xf32>
      %c0_10 = arith.constant 0 : index
      %c0_11 = arith.constant 0 : index
      %16 = vector.load %arg5[%c0_10, %c0_11] : memref<256x128xf32, #tpu.memory_space<vmem>>, vector<256x128xf32>
      tpu.vector_store %arg5[%c0_10, %c0_11], %15 {strides = array<i32>} : memref<256x128xf32, #tpu.memory_space<vmem>>, vector<256x128xf32>,
    } else {
    }
    %c512_i32 = arith.constant 512 : i32
    %3 = arith.muli %arg1, %c512_i32 : i32
    %4 = tpu.assume_multiple %3, 512 : i32
    %5 = arith.index_cast %4 : i32 to index
    %c0 = arith.constant 0 : index
    %6 = vector.load %arg3[%5, %c0] : memref<512x128xbf16, #tpu.memory_space<vmem>>, vector<512x128xbf16>
    %c0_1 = arith.constant 0 : index
    %c0_2 = arith.constant 0 : index
    %7 = vector.load %arg5[%c0_1, %c0_2] : memref<256x128xf32, #tpu.memory_space<vmem>>, vector<256x128xf32>
    %c0_3 = arith.constant 0 : index
    %c0_4 = arith.constant 0 : index
    %8 = vector.load %arg2[%c0_3, %c0_4] : memref<256x512xbf16, #tpu.memory_space<vmem>>, vector<256x512xbf16>
    %cst = arith.constant dense<0.000000e+00> : vector<256x128xf32>
    %9 = tpu.matmul %8, %6, %cst {dimension_numbers = #tpu.dot_dimension_numbers<[1], [0], [0], [1], [0, 0, 1, 1], [], []>} : vector<256x512xbf16>, vector<512x128xbf16>, vector<256x128xf32> -> vector<256x128xf32>
    %10 = arith.addf %7, %9 : vector<256x128xf32>
    %c0_5 = arith.constant 0 : index
    %c0_6 = arith.constant 0 : index
    %11 = vector.load %arg5[%c0_5, %c0_6] : memref<256x128xf32, #tpu.memory_space<vmem>>, vector<256x128xf32>
    tpu.vector_store %arg5[%c0_5, %c0_6], %10 {strides = array<i32>} : memref<256x128xf32, #tpu.memory_space<vmem>>, vector<256x128xf32>,
    %c0_i32_7 = arith.constant 0 : i32
    %12 = arith.cmpi eq, %arg1, %c0_i32_7 : i32
    %13 = arith.extui %12 : i1 to i32
    %c0_i32_8 = arith.constant 0 : i32
    %14 = arith.cmpi ne, %13, %c0_i32_8 : i32
    scf.if %14 {
      %c0_9 = arith.constant 0 : index
      %c0_10 = arith.constant 0 : index
      %15 = vector.load %arg5[%c0_9, %c0_10] : memref<256x128xf32, #tpu.memory_space<vmem>>, vector<256x128xf32>
      %c0_11 = arith.constant 0 : index
      %c0_12 = arith.constant 0 : index
      %16 = vector.load %arg4[%c0_11, %c0_12] : memref<256x128xf32, #tpu.memory_space<vmem>>, vector<256x128xf32>
      tpu.vector_store %arg4[%c0_11, %c0_12], %15 {strides = array<i32>} : memref<256x128xf32, #tpu.memory_space<vmem>>, vector<256x128xf32>,
    } else {
    }
    return
  }
  func.func @transform_0(%arg0: i32, %arg1: i32) -> (i32, i32) {
    %c0_i32 = arith.constant 0 : i32
    return %arg0, %arg1 : i32, i32
  }
  func.func @transform_1(%arg0: i32, %arg1: i32) -> (i32, i32) {
    %c0_i32 = arith.constant 0 : i32
    %c0_i32_0 = arith.constant 0 : i32
    %c0_i32_1 = arith.constant 0 : i32
    return %c0_i32, %c0_i32_0 : i32, i32
  }
  func.func @transform_2(%arg0: i32, %arg1: i32) -> (i32, i32) {
    %c0_i32 = arith.constant 0 : i32
    %c0_i32_0 = arith.constant 0 : i32
    return %arg0, %c0_i32 : i32, i32
  }
}

</mosaic_0001>

<llo_original>
// kernel: gcn_net_forward.2
$region0: #{gcn_net_forward.2}
  #allocation0 [shape = 'u32[]', space=smem, size = 0x4, offset = 0x4, fixed_abs, tag = 'smem constant byte address 0x4 - core index']
  #allocation1 [shape = 'u32[72,128]{1,0:T(1,128)}', space=vmem, size = 0x9000, scoped, tag = 'internal scratch']
  #allocation2 [shape = 'f32[256,128]{1,0:T(8,128)}', space=vmem, size = 0x20000, scoped, tag = 'scratch operand']
  %s0 = inlined_call_operand.hbm [shape: bf16[512,512], index: 0, kind: input, shape index: {}]
  %s1 = inlined_call_operand.vmem [shape: bf16[512,128], index: 1, kind: input, shape index: {}]
  %s2 = inlined_call_operand.vmem [shape: f32[128,128], index: 2, kind: input, shape index: {}]
  %s3 = inlined_call_operand.vmem [shape: bf16[512,128], index: 3, kind: output, shape index: {}]
  %s4 = sld [smem:[#allocation0]]
  $region57: #{gcn_net_forward.2} parent=0
    _
  %s6 = ssub.s32 1, %s4
  %s7 = scalar_select 0, %s6, %s4
  $region1: #{gcn_net_forward.2} parent=0
    #allocation3 [shape = 'u8[524288]{0}', space=vmem, size = 0x80000, scoped, tag = 'input window, operand 0']
    #allocation4 [shape = 's32[2]{0}', space=sflag, size = 0x8, scoped, tag = 'scoped memory for gcn_net_forward.2']
    %8 = vsyncpa [#allocation4], 0
    %s9 = scalar_lea.sflag [#allocation4], 1
    %10 = vsyncpa %s9, 0
    loop: start=0, step=1, limit=4
    $region2: #{gcn_net_forward.2} parent=1 // loop_pre_header
      _
    $region3: #{gcn_net_forward.2} parent=1 // loop_header
      %s12 = sphi 0, %s16
      %p13 = scmp.ge.s32.totalorder %s12, 4
      %s19 = sphi 0, %s31
      %s20 = sphi 0, %s27
      %s21 = sphi 0, %s19
      %s22 = sphi 0, %s20
      %s23 = sphi 0, %s21
      %s24 = sphi 0, %s22
      %s36 = sphi 0, %s38
      %s39 = sphi 0, %s36
      %s40 = sphi 0, %s39
      %s56 = sphi 0, %s40
      %s60 = sphi 0, %s60
      %s62 = sphi 0, %s60
      %s63 = sphi 0, %s62
      %s77 = sphi 0, %s63
      %s81 = sphi 0, %s81
      %s83 = sphi 0, %s81
      %s84 = sphi 0, %s83
      %s98 = sphi 0, %s84
      %s104 = sphi 0, %s106
      %s107 = sphi 0, %s104
      %s108 = sphi 0, %s107
      %s124 = sphi 0, %s108
    $region4: #{gcn_net_forward.2} parent=1 // loop_header_branch
      %15 = sbr.rel (%p13) target = $region8
    $region5: #{gcn_net_forward.2} parent=1 // loop_body
      %s17 = ssub.s32 %s12, 1
      %s18 = ssub.s32 %s12, 2
      %s25 = sadd.s32 1, %s20
      %p26 = scmp.ge.s32.totalorder %s25, 1
      %s27 = scalar_select %p26, 0, %s25
      %s28 = sadd.s32 1, %s19
      %s29 = scalar_select %p26, %s28, %s19
      %p30 = scmp.ge.s32.totalorder %s29, 2
      %s31 = scalar_select %p30, 0, %s29
      %s32 = ssub.s32 %s19, %s31
      %s33 = ssub.s32 %s20, %s27
      %s34 = sor.u32 %s32, %s33
      %p35 = scmp.eq.s32.totalorder %s34, 0
      %s37 = sadd.s32 %s36, 1
      %s38 = scalar_select %p35, %s36, %s37
      %p41 = pneg %p35
      %p42 = scmp.eq.s32.totalorder %s12, 1
      %p43 = por %p41, %p42
      %p44 = scmp.ne.s32.totalorder %s36, %s39
      %p45 = scmp.eq.s32.totalorder %s12, 0
      %p46 = por %p44, %p45
      %p47 = scmp.ne.s32.totalorder %s36, %s39
      %p48 = scmp.eq.s32.totalorder %s17, 1
      %p49 = por %p47, %p48
      %p50 = scmp.ne.s32.totalorder %s39, %s40
      %p51 = scmp.eq.s32.totalorder %s17, 0
      %p52 = por %p50, %p51
      %p53 = scmp.ne.s32.totalorder %s39, %s40
      %p54 = scmp.eq.s32.totalorder %s18, 1
      %p55 = por %p53, %p54
      %p57 = scmp.ne.s32.totalorder %s40, %s56
      %p58 = scmp.eq.s32.totalorder %s18, 0
      %p59 = por %p57, %p58
      %s61 = sadd.s32 %s60, 1
      %p64 = scmp.eq.s32.totalorder %s12, 1
      %p65 = scmp.ne.s32.totalorder %s60, %s62
      %p66 = scmp.eq.s32.totalorder %s12, 0
      %p67 = por %p65, %p66
      %p68 = scmp.ne.s32.totalorder %s60, %s62
      %p69 = scmp.eq.s32.totalorder %s17, 1
      %p70 = por %p68, %p69
      %p71 = scmp.ne.s32.totalorder %s62, %s63
      %p72 = scmp.eq.s32.totalorder %s17, 0
      %p73 = por %p71, %p72
      %p74 = scmp.ne.s32.totalorder %s62, %s63
      %p75 = scmp.eq.s32.totalorder %s18, 1
      %p76 = por %p74, %p75
      %p78 = scmp.ne.s32.totalorder %s63, %s77
      %p79 = scmp.eq.s32.totalorder %s18, 0
      %p80 = por %p78, %p79
      %s82 = sadd.s32 %s81, 1
      %p85 = scmp.eq.s32.totalorder %s12, 1
      %p86 = scmp.ne.s32.totalorder %s81, %s83
      %p87 = scmp.eq.s32.totalorder %s12, 0
      %p88 = por %p86, %p87
      %p89 = scmp.ne.s32.totalorder %s81, %s83
      %p90 = scmp.eq.s32.totalorder %s17, 1
      %p91 = por %p89, %p90
      %p92 = scmp.ne.s32.totalorder %s83, %s84
      %p93 = scmp.eq.s32.totalorder %s17, 0
      %p94 = por %p92, %p93
      %p95 = scmp.ne.s32.totalorder %s83, %s84
      %p96 = scmp.eq.s32.totalorder %s18, 1
      %p97 = por %p95, %p96
      %p99 = scmp.ne.s32.totalorder %s84, %s98
      %p100 = scmp.eq.s32.totalorder %s18, 0
      %p101 = por %p99, %p100
      %s102 = ssub.s32 %s19, %s31
      %p103 = scmp.eq.s32.totalorder %s102, 0
      %s105 = sadd.s32 %s104, 1
      %s106 = scalar_select %p103, %s104, %s105
      %p109 = pneg %p103
      %p110 = scmp.eq.s32.totalorder %s12, 1
      %p111 = por %p109, %p110
      %p112 = scmp.ne.s32.totalorder %s104, %s107
      %p113 = scmp.eq.s32.totalorder %s12, 0
      %p114 = por %p112, %p113
      %p115 = scmp.ne.s32.totalorder %s104, %s107
      %p116 = scmp.eq.s32.totalorder %s17, 1
      %p117 = por %p115, %p116
      %p118 = scmp.ne.s32.totalorder %s107, %s108
      %p119 = scmp.eq.s32.totalorder %s17, 0
      %p120 = por %p118, %p119
      %p121 = scmp.ne.s32.totalorder %s107, %s108
      %p122 = scmp.eq.s32.totalorder %s18, 1
      %p123 = por %p121, %p122
      %p125 = scmp.ne.s32.totalorder %s108, %s124
      %p126 = scmp.eq.s32.totalorder %s18, 0
      %p127 = por %p125, %p126
      %p128 = scmp.le.s32.totalorder 1, %s12
      %p129 = scmp.lt.s32.totalorder %s12, 3
      %p130 = pnand %p128, %p129
      %p131 = pneg %p130
      // Predicated region
      $region9: #{gcn_net_forward.2} parent=5 // pred_check
        _
      $region10: #{gcn_net_forward.2} parent=5 // pred_check_branch
        %133 = sbr.rel (%p130) target = $region12
      $region11: #{gcn_net_forward.2} parent=5 // pred_region
        %s134 = ssub.s32 %s12, 1
        // Predicated region
        $region13: #{gcn_net_forward.2} parent=11 // pred_check
          %p135 = pneg %p73
        $region14: #{gcn_net_forward.2} parent=11 // pred_check_branch
          %137 = sbr.rel (%p135) target = $region16
        $region15: #{gcn_net_forward.2} parent=11 // pred_region
          _
        $region16: #{gcn_net_forward.2} parent=11 // pred_fallthru
          _
        // Predicated region
        $region17: #{gcn_net_forward.2} parent=11 // pred_check
          %p138 = pneg %p94
        $region18: #{gcn_net_forward.2} parent=11 // pred_check_branch
          %140 = sbr.rel (%p138) target = $region20
        $region19: #{gcn_net_forward.2} parent=11 // pred_region
          _
        $region20: #{gcn_net_forward.2} parent=11 // pred_fallthru
          _
      $region12: #{gcn_net_forward.2} parent=5 // pred_fallthru
        _
      %p141 = scmp.lt.s32.totalorder %s12, 2
      // Predicated region
      $region21: #{gcn_net_forward.2} parent=5 // pred_check
        %p142 = pneg %p141
      $region22: #{gcn_net_forward.2} parent=5 // pred_check_branch
        %144 = sbr.rel (%p142) target = $region24
      $region23: #{gcn_net_forward.2} parent=5 // pred_region
        // Predicated region
        $region25: #{gcn_net_forward.2} parent=23 // pred_check
          %p145 = pneg %p46
        $region26: #{gcn_net_forward.2} parent=23 // pred_check_branch
          %147 = sbr.rel (%p145) target = $region28
        $region27: #{gcn_net_forward.2} parent=23 // pred_region
          %s148 = sand.u32 %s36, 1
          %s149 = scalar_lea.sflag [#allocation4], %s148
          %s150 = sand.u32 %s36, 1
          %s151 = smul.addr %s150, 512
          %s152 = scalar_lea.vmem [#allocation3], %s151
          %s153 = smul.u32 32, %s19
          %s154 = smul.u32 4, %s20
          %156 = vsyncadd %s149, 0
          %s157 = smul.addr %s153, 4
          %s158 = sadd.s32 %s154, %s157
          %s159 = smul.addr %s158, 4
          %s160 = scalar_lea.hbm %s0, %s159
          %s161 = sshll.u32 %s160, 4
          %s162 = int_to_ptr.hbm [resolvable:$true] %s161
          %s163 = sshll.u32 %s152, 4
          %s164 = int_to_ptr.vmem [resolvable:$true] %s163
          %169 = dma.hbm_to_vmem [thread:$0]  %s162, 8192, %s164, %s149, 256, 256, 16
        $region28: #{gcn_net_forward.2} parent=23 // pred_fallthru
          _
      $region24: #{gcn_net_forward.2} parent=5 // pred_fallthru
        _
      %p170 = scmp.le.s32.totalorder 1, %s12
      %p171 = scmp.lt.s32.totalorder %s12, 3
      %p172 = pnand %p170, %p171
      %p173 = pneg %p172
      // Predicated region
      $region29: #{gcn_net_forward.2} parent=5 // pred_check
        _
      $region30: #{gcn_net_forward.2} parent=5 // pred_check_branch
        %175 = sbr.rel (%p172) target = $region32
      $region31: #{gcn_net_forward.2} parent=5 // pred_region
        %s176 = ssub.s32 %s12, 1
        %s177 = sand.u32 %s39, 1
        %s178 = scalar_lea.sflag [#allocation4], %s177
        %s179 = sand.u32 %s39, 1
        %s180 = smul.addr %s179, 512
        %s181 = scalar_lea.vmem [#allocation3], %s180
        // Predicated region
        $region33: #{gcn_net_forward.2} parent=31 // pred_check
          %p182 = pneg %p52
        $region34: #{gcn_net_forward.2} parent=31 // pred_check_branch
          %184 = sbr.rel (%p182) target = $region36
        $region35: #{gcn_net_forward.2} parent=31 // pred_region
          %186 = dma.done %s178, 8192
        $region36: #{gcn_net_forward.2} parent=31 // pred_fallthru
          _
        %s187 = sand.u32 %s39, 1
        %s188 = scalar_lea.sflag [#allocation4], %s187
        %s189 = sand.u32 %s39, 1
        %s190 = smul.addr %s189, 512
        %s191 = scalar_lea.vmem [#allocation3], %s190
        %p192 = pneg %p52
        %p193 = pneg %p49
        %p194 = pneg %p73
        %p195 = pneg %p70
        %p196 = pneg %p94
        %p197 = pneg %p91
        %p198 = pneg %p120
        %p199 = pneg %p117
        %s200 = smul.u32 32, %s21
        %p201 = scmp.lt.s32.totalorder %s200, 63
        %s202 = scalar_select %p201, %s200, 63
        %s203 = smul.addr %s202, 4
        %s204 = scalar_lea.vmem %s3, %s203
        %s205 = smul.u32 32, %s21
        %s206 = smul.u32 4, %s22
        %s207 = smul.u32 32, %s21
        %p208 = scmp.lt.s32.totalorder %s207, 63
        %s209 = scalar_select %p208, %s207, 63
        %s210 = smul.addr %s209, 4
        %s211 = scalar_lea.vmem %s3, %s210
        %s212 = smul.u32 32, %s21
        %p213 = scmp.eq.s32.totalorder %s22, 0
        // Predicated region
        $region37: #{gcn_net_forward.2} parent=31 // pred_check
          %p214 = pneg %p213
        $region38: #{gcn_net_forward.2} parent=31 // pred_check_branch
          %216 = sbr.rel (%p214) target = $region40
        $region39: #{gcn_net_forward.2} parent=31 // pred_region
          %217 = vst [vmem:[#allocation2] sm:$0xff] 0.0
          %218 = vst [vmem:[#allocation2 + $0x8] sm:$0xff] 0.0
          %219 = vst [vmem:[#allocation2 + $0x10] sm:$0xff] 0.0
          %220 = vst [vmem:[#allocation2 + $0x18] sm:$0xff] 0.0
          %221 = vst [vmem:[#allocation2 + $0x20] sm:$0xff] 0.0
          %222 = vst [vmem:[#allocation2 + $0x28] sm:$0xff] 0.0
          %223 = vst [vmem:[#allocation2 + $0x30] sm:$0xff] 0.0
          %224 = vst [vmem:[#allocation2 + $0x38] sm:$0xff] 0.0
          %225 = vst [vmem:[#allocation2 + $0x40] sm:$0xff] 0.0
          %226 = vst [vmem:[#allocation2 + $0x48] sm:$0xff] 0.0
          %227 = vst [vmem:[#allocation2 + $0x50] sm:$0xff] 0.0
          %228 = vst [vmem:[#allocation2 + $0x58] sm:$0xff] 0.0
          %229 = vst [vmem:[#allocation2 + $0x60] sm:$0xff] 0.0
          %230 = vst [vmem:[#allocation2 + $0x68] sm:$0xff] 0.0
          %231 = vst [vmem:[#allocation2 + $0x70] sm:$0xff] 0.0
          %232 = vst [vmem:[#allocation2 + $0x78] sm:$0xff] 0.0
          %233 = vst [vmem:[#allocation2 + $0x80] sm:$0xff] 0.0
          %234 = vst [vmem:[#allocation2 + $0x88] sm:$0xff] 0.0
          %235 = vst [vmem:[#allocation2 + $0x90] sm:$0xff] 0.0
          %236 = vst [vmem:[#allocation2 + $0x98] sm:$0xff] 0.0
          %237 = vst [vmem:[#allocation2 + $0xa0] sm:$0xff] 0.0
          %238 = vst [vmem:[#allocation2 + $0xa8] sm:$0xff] 0.0
          %239 = vst [vmem:[#allocation2 + $0xb0] sm:$0xff] 0.0
          %240 = vst [vmem:[#allocation2 + $0xb8] sm:$0xff] 0.0
          %241 = vst [vmem:[#allocation2 + $0xc0] sm:$0xff] 0.0
          %242 = vst [vmem:[#allocation2 + $0xc8] sm:$0xff] 0.0
          %243 = vst [vmem:[#allocation2 + $0xd0] sm:$0xff] 0.0
          %244 = vst [vmem:[#allocation2 + $0xd8] sm:$0xff] 0.0
          %245 = vst [vmem:[#allocation2 + $0xe0] sm:$0xff] 0.0
          %246 = vst [vmem:[#allocation2 + $0xe8] sm:$0xff] 0.0
          %247 = vst [vmem:[#allocation2 + $0xf0] sm:$0xff] 0.0
          %248 = vst [vmem:[#allocation2 + $0xf8] sm:$0xff] 0.0
        $region40: #{gcn_net_forward.2} parent=31 // pred_fallthru
          _
        %s249 = smul.u32 %s22, 512
        %s250 = sshra.s32 %s249, 3
        %s251 = sand.u32 %s249, 7
        %s252 = smul.addr %s250, 4
        %s253 = scalar_lea.vmem %s1, %s252
        %v254 = vld [vmem:[%s253] sm:$0xf]
        %v255 = vld [vmem:[%s253 + $0x4] sm:$0xf]
        %v256 = vld [vmem:[%s253 + $0x8] sm:$0xf]
        %v257 = vld [vmem:[%s253 + $0xc] sm:$0xf]
        %v258 = vld [vmem:[%s253 + $0x10] sm:$0xf]
        %v259 = vld [vmem:[%s253 + $0x14] sm:$0xf]
        %v260 = vld [vmem:[%s253 + $0x18] sm:$0xf]
        %v261 = vld [vmem:[%s253 + $0x1c] sm:$0xf]
        %v262 = vld [vmem:[%s253 + $0x20] sm:$0xf]
        %v263 = vld [vmem:[%s253 + $0x24] sm:$0xf]
        %v264 = vld [vmem:[%s253 + $0x28] sm:$0xf]
        %v265 = vld [vmem:[%s253 + $0x2c] sm:$0xf]
        %v266 = vld [vmem:[%s253 + $0x30] sm:$0xf]
        %v267 = vld [vmem:[%s253 + $0x34] sm:$0xf]
        %v268 = vld [vmem:[%s253 + $0x38] sm:$0xf]
        %v269 = vld [vmem:[%s253 + $0x3c] sm:$0xf]
        %v270 = vld [vmem:[%s253 + $0x40] sm:$0xf]
        %v271 = vld [vmem:[%s253 + $0x44] sm:$0xf]
        %v272 = vld [vmem:[%s253 + $0x48] sm:$0xf]
        %v273 = vld [vmem:[%s253 + $0x4c] sm:$0xf]
        %v274 = vld [vmem:[%s253 + $0x50] sm:$0xf]
        %v275 = vld [vmem:[%s253 + $0x54] sm:$0xf]
        %v276 = vld [vmem:[%s253 + $0x58] sm:$0xf]
        %v277 = vld [vmem:[%s253 + $0x5c] sm:$0xf]
        %v278 = vld [vmem:[%s253 + $0x60] sm:$0xf]
        %v279 = vld [vmem:[%s253 + $0x64] sm:$0xf]
        %v280 = vld [vmem:[%s253 + $0x68] sm:$0xf]
        %v281 = vld [vmem:[%s253 + $0x6c] sm:$0xf]
        %v282 = vld [vmem:[%s253 + $0x70] sm:$0xf]
        %v283 = vld [vmem:[%s253 + $0x74] sm:$0xf]
        %v284 = vld [vmem:[%s253 + $0x78] sm:$0xf]
        %v285 = vld [vmem:[%s253 + $0x7c] sm:$0xf]
        %v286 = vld [vmem:[%s253 + $0x80] sm:$0xf]
        %v287 = vld [vmem:[%s253 + $0x84] sm:$0xf]
        %v288 = vld [vmem:[%s253 + $0x88] sm:$0xf]
        %v289 = vld [vmem:[%s253 + $0x8c] sm:$0xf]
        %v290 = vld [vmem:[%s253 + $0x90] sm:$0xf]
        %v291 = vld [vmem:[%s253 + $0x94] sm:$0xf]
        %v292 = vld [vmem:[%s253 + $0x98] sm:$0xf]
        %v293 = vld [vmem:[%s253 + $0x9c] sm:$0xf]
        %v294 = vld [vmem:[%s253 + $0xa0] sm:$0xf]
        %v295 = vld [vmem:[%s253 + $0xa4] sm:$0xf]
        %v296 = vld [vmem:[%s253 + $0xa8] sm:$0xf]
        %v297 = vld [vmem:[%s253 + $0xac] sm:$0xf]
        %v298 = vld [vmem:[%s253 + $0xb0] sm:$0xf]
        %v299 = vld [vmem:[%s253 + $0xb4] sm:$0xf]
        %v300 = vld [vmem:[%s253 + $0xb8] sm:$0xf]
        %v301 = vld [vmem:[%s253 + $0xbc] sm:$0xf]
        %v302 = vld [vmem:[%s253 + $0xc0] sm:$0xf]
        %v303 = vld [vmem:[%s253 + $0xc4] sm:$0xf]
        %v304 = vld [vmem:[%s253 + $0xc8] sm:$0xf]
        %v305 = vld [vmem:[%s253 + $0xcc] sm:$0xf]
        %v306 = vld [vmem:[%s253 + $0xd0] sm:$0xf]
        %v307 = vld [vmem:[%s253 + $0xd4] sm:$0xf]
        %v308 = vld [vmem:[%s253 + $0xd8] sm:$0xf]
        %v309 = vld [vmem:[%s253 + $0xdc] sm:$0xf]
        %v310 = vld [vmem:[%s253 + $0xe0] sm:$0xf]
        %v311 = vld [vmem:[%s253 + $0xe4] sm:$0xf]
        %v312 = vld [vmem:[%s253 + $0xe8] sm:$0xf]
        %v313 = vld [vmem:[%s253 + $0xec] sm:$0xf]
        %v314 = vld [vmem:[%s253 + $0xf0] sm:$0xf]
        %v315 = vld [vmem:[%s253 + $0xf4] sm:$0xf]
        %v316 = vld [vmem:[%s253 + $0xf8] sm:$0xf]
        %v317 = vld [vmem:[%s253 + $0xfc] sm:$0xf]
        %v318 = vld [vmem:[#allocation2] sm:$0xff]
        %v319 = vld [vmem:[#allocation2 + $0x8] sm:$0xff]
        %v320 = vld [vmem:[#allocation2 + $0x10] sm:$0xff]
        %v321 = vld [vmem:[#allocation2 + $0x18] sm:$0xff]
        %v322 = vld [vmem:[#allocation2 + $0x20] sm:$0xff]
        %v323 = vld [vmem:[#allocation2 + $0x28] sm:$0xff]
        %v324 = vld [vmem:[#allocation2 + $0x30] sm:$0xff]
        %v325 = vld [vmem:[#allocation2 + $0x38] sm:$0xff]
        %v326 = vld [vmem:[#allocation2 + $0x40] sm:$0xff]
        %v327 = vld [vmem:[#allocation2 + $0x48] sm:$0xff]
        %v328 = vld [vmem:[#allocation2 + $0x50] sm:$0xff]
        %v329 = vld [vmem:[#allocation2 + $0x58] sm:$0xff]
        %v330 = vld [vmem:[#allocation2 + $0x60] sm:$0xff]
        %v331 = vld [vmem:[#allocation2 + $0x68] sm:$0xff]
        %v332 = vld [vmem:[#allocation2 + $0x70] sm:$0xff]
        %v333 = vld [vmem:[#allocation2 + $0x78] sm:$0xff]
        %v334 = vld [vmem:[#allocation2 + $0x80] sm:$0xff]
        %v335 = vld [vmem:[#allocation2 + $0x88] sm:$0xff]
        %v336 = vld [vmem:[#allocation2 + $0x90] sm:$0xff]
        %v337 = vld [vmem:[#allocation2 + $0x98] sm:$0xff]
        %v338 = vld [vmem:[#allocation2 + $0xa0] sm:$0xff]
        %v339 = vld [vmem:[#allocation2 + $0xa8] sm:$0xff]
        %v340 = vld [vmem:[#allocation2 + $0xb0] sm:$0xff]
        %v341 = vld [vmem:[#allocation2 + $0xb8] sm:$0xff]
        %v342 = vld [vmem:[#allocation2 + $0xc0] sm:$0xff]
        %v343 = vld [vmem:[#allocation2 + $0xc8] sm:$0xff]
        %v344 = vld [vmem:[#allocation2 + $0xd0] sm:$0xff]
        %v345 = vld [vmem:[#allocation2 + $0xd8] sm:$0xff]
        %v346 = vld [vmem:[#allocation2 + $0xe0] sm:$0xff]
        %v347 = vld [vmem:[#allocation2 + $0xe8] sm:$0xff]
        %v348 = vld [vmem:[#allocation2 + $0xf0] sm:$0xff]
        %v349 = vld [vmem:[#allocation2 + $0xf8] sm:$0xff]
        %v350 = vld [vmem:[%s181] sm:$0xff]
        %v351 = vld [vmem:[%s181 + $0x8] sm:$0xff]
        %v352 = vld [vmem:[%s181 + $0x10] sm:$0xff]
        %v353 = vld [vmem:[%s181 + $0x18] sm:$0xff]
        %v354 = vld [vmem:[%s181 + $0x20] sm:$0xff]
        %v355 = vld [vmem:[%s181 + $0x28] sm:$0xff]
        %v356 = vld [vmem:[%s181 + $0x30] sm:$0xff]
        %v357 = vld [vmem:[%s181 + $0x38] sm:$0xff]
        %v358 = vld [vmem:[%s181 + $0x40] sm:$0xff]
        %v359 = vld [vmem:[%s181 + $0x48] sm:$0xff]
        %v360 = vld [vmem:[%s181 + $0x50] sm:$0xff]
        %v361 = vld [vmem:[%s181 + $0x58] sm:$0xff]
        %v362 = vld [vmem:[%s181 + $0x60] sm:$0xff]
        %v363 = vld [vmem:[%s181 + $0x68] sm:$0xff]
        %v364 = vld [vmem:[%s181 + $0x70] sm:$0xff]
        %v365 = vld [vmem:[%s181 + $0x78] sm:$0xff]
        %v366 = vld [vmem:[%s181 + $0x80] sm:$0xff]
        %v367 = vld [vmem:[%s181 + $0x88] sm:$0xff]
        %v368 = vld [vmem:[%s181 + $0x90] sm:$0xff]
        %v369 = vld [vmem:[%s181 + $0x98] sm:$0xff]
        %v370 = vld [vmem:[%s181 + $0xa0] sm:$0xff]
        %v371 = vld [vmem:[%s181 + $0xa8] sm:$0xff]
        %v372 = vld [vmem:[%s181 + $0xb0] sm:$0xff]
        %v373 = vld [vmem:[%s181 + $0xb8] sm:$0xff]
        %v374 = vld [vmem:[%s181 + $0xc0] sm:$0xff]
        %v375 = vld [vmem:[%s181 + $0xc8] sm:$0xff]
        %v376 = vld [vmem:[%s181 + $0xd0] sm:$0xff]
        %v377 = vld [vmem:[%s181 + $0xd8] sm:$0xff]
        %v378 = vld [vmem:[%s181 + $0xe0] sm:$0xff]
        %v379 = vld [vmem:[%s181 + $0xe8] sm:$0xff]
        %v380 = vld [vmem:[%s181 + $0xf0] sm:$0xff]
        %v381 = vld [vmem:[%s181 + $0xf8] sm:$0xff]
        %v382 = vld [vmem:[%s181 + $0x100] sm:$0xff]
        %v383 = vld [vmem:[%s181 + $0x108] sm:$0xff]
        %v384 = vld [vmem:[%s181 + $0x110] sm:$0xff]
        %v385 = vld [vmem:[%s181 + $0x118] sm:$0xff]
        %v386 = vld [vmem:[%s181 + $0x120] sm:$0xff]
        %v387 = vld [vmem:[%s181 + $0x128] sm:$0xff]
        %v388 = vld [vmem:[%s181 + $0x130] sm:$0xff]
        %v389 = vld [vmem:[%s181 + $0x138] sm:$0xff]
        %v390 = vld [vmem:[%s181 + $0x140] sm:$0xff]
        %v391 = vld [vmem:[%s181 + $0x148] sm:$0xff]
        %v392 = vld [vmem:[%s181 + $0x150] sm:$0xff]
        %v393 = vld [vmem:[%s181 + $0x158] sm:$0xff]
        %v394 = vld [vmem:[%s181 + $0x160] sm:$0xff]
        %v395 = vld [vmem:[%s181 + $0x168] sm:$0xff]
        %v396 = vld [vmem:[%s181 + $0x170] sm:$0xff]
        %v397 = vld [vmem:[%s181 + $0x178] sm:$0xff]
        %v398 = vld [vmem:[%s181 + $0x180] sm:$0xff]
        %v399 = vld [vmem:[%s181 + $0x188] sm:$0xff]
        %v400 = vld [vmem:[%s181 + $0x190] sm:$0xff]
        %v401 = vld [vmem:[%s181 + $0x198] sm:$0xff]
        %v402 = vld [vmem:[%s181 + $0x1a0] sm:$0xff]
        %v403 = vld [vmem:[%s181 + $0x1a8] sm:$0xff]
        %v404 = vld [vmem:[%s181 + $0x1b0] sm:$0xff]
        %v405 = vld [vmem:[%s181 + $0x1b8] sm:$0xff]
        %v406 = vld [vmem:[%s181 + $0x1c0] sm:$0xff]
        %v407 = vld [vmem:[%s181 + $0x1c8] sm:$0xff]
        %v408 = vld [vmem:[%s181 + $0x1d0] sm:$0xff]
        %v409 = vld [vmem:[%s181 + $0x1d8] sm:$0xff]
        %v410 = vld [vmem:[%s181 + $0x1e0] sm:$0xff]
        %v411 = vld [vmem:[%s181 + $0x1e8] sm:$0xff]
        %v412 = vld [vmem:[%s181 + $0x1f0] sm:$0xff]
        %v413 = vld [vmem:[%s181 + $0x1f8] sm:$0xff]
        %v478 = vunpack.c.l.b16 %v350
        %v479 = vunpack.c.h.b16 %v350
        %v480 = vunpack.c.l.b16 %v351
        %v481 = vunpack.c.h.b16 %v351
        %v482 = vunpack.c.l.b16 %v352
        %v483 = vunpack.c.h.b16 %v352
        %v484 = vunpack.c.l.b16 %v353
        %v485 = vunpack.c.h.b16 %v353
        %v486 = vunpack.c.l.b16 %v354
        %v487 = vunpack.c.h.b16 %v354
        %v488 = vunpack.c.l.b16 %v355
        %v489 = vunpack.c.h.b16 %v355
        %v490 = vunpack.c.l.b16 %v356
        %v491 = vunpack.c.h.b16 %v356
        %v492 = vunpack.c.l.b16 %v357
        %v493 = vunpack.c.h.b16 %v357
        %v494 = vunpack.c.l.b16 %v358
        %v495 = vunpack.c.h.b16 %v358
        %v496 = vunpack.c.l.b16 %v359
        %v497 = vunpack.c.h.b16 %v359
        %v498 = vunpack.c.l.b16 %v360
        %v499 = vunpack.c.h.b16 %v360
        %v500 = vunpack.c.l.b16 %v361
        %v501 = vunpack.c.h.b16 %v361
        %v502 = vunpack.c.l.b16 %v362
        %v503 = vunpack.c.h.b16 %v362
        %v504 = vunpack.c.l.b16 %v363
        %v505 = vunpack.c.h.b16 %v363
        %v506 = vunpack.c.l.b16 %v364
        %v507 = vunpack.c.h.b16 %v364
        %v508 = vunpack.c.l.b16 %v365
        %v509 = vunpack.c.h.b16 %v365
        %v510 = vunpack.c.l.b16 %v366
        %v511 = vunpack.c.h.b16 %v366
        %v512 = vunpack.c.l.b16 %v367
        %v513 = vunpack.c.h.b16 %v367
        %v514 = vunpack.c.l.b16 %v368
        %v515 = vunpack.c.h.b16 %v368
        %v516 = vunpack.c.l.b16 %v369
        %v517 = vunpack.c.h.b16 %v369
        %v518 = vunpack.c.l.b16 %v370
        %v519 = vunpack.c.h.b16 %v370
        %v520 = vunpack.c.l.b16 %v371
        %v521 = vunpack.c.h.b16 %v371
        %v522 = vunpack.c.l.b16 %v372
        %v523 = vunpack.c.h.b16 %v372
        %v524 = vunpack.c.l.b16 %v373
        %v525 = vunpack.c.h.b16 %v373
        %v526 = vunpack.c.l.b16 %v374
        %v527 = vunpack.c.h.b16 %v374
        %v528 = vunpack.c.l.b16 %v375
        %v529 = vunpack.c.h.b16 %v375
        %v530 = vunpack.c.l.b16 %v376
        %v531 = vunpack.c.h.b16 %v376
        %v532 = vunpack.c.l.b16 %v377
        %v533 = vunpack.c.h.b16 %v377
        %v534 = vunpack.c.l.b16 %v378
        %v535 = vunpack.c.h.b16 %v378
        %v536 = vunpack.c.l.b16 %v379
        %v537 = vunpack.c.h.b16 %v379
        %v538 = vunpack.c.l.b16 %v380
        %v539 = vunpack.c.h.b16 %v380
        %v540 = vunpack.c.l.b16 %v381
        %v541 = vunpack.c.h.b16 %v381
        %v542 = vunpack.c.l.b16 %v382
        %v543 = vunpack.c.h.b16 %v382
        %v544 = vunpack.c.l.b16 %v383
        %v545 = vunpack.c.h.b16 %v383
        %v546 = vunpack.c.l.b16 %v384
        %v547 = vunpack.c.h.b16 %v384
        %v548 = vunpack.c.l.b16 %v385
        %v549 = vunpack.c.h.b16 %v385
        %v550 = vunpack.c.l.b16 %v386
        %v551 = vunpack.c.h.b16 %v386
        %v552 = vunpack.c.l.b16 %v387
        %v553 = vunpack.c.h.b16 %v387
        %v554 = vunpack.c.l.b16 %v388
        %v555 = vunpack.c.h.b16 %v388
        %v556 = vunpack.c.l.b16 %v389
        %v557 = vunpack.c.h.b16 %v389
        %v558 = vunpack.c.l.b16 %v390
        %v559 = vunpack.c.h.b16 %v390
        %v560 = vunpack.c.l.b16 %v391
        %v561 = vunpack.c.h.b16 %v391
        %v562 = vunpack.c.l.b16 %v392
        %v563 = vunpack.c.h.b16 %v392
        %v564 = vunpack.c.l.b16 %v393
        %v565 = vunpack.c.h.b16 %v393
        %v566 = vunpack.c.l.b16 %v394
        %v567 = vunpack.c.h.b16 %v394
        %v568 = vunpack.c.l.b16 %v395
        %v569 = vunpack.c.h.b16 %v395
        %v570 = vunpack.c.l.b16 %v396
        %v571 = vunpack.c.h.b16 %v396
        %v572 = vunpack.c.l.b16 %v397
        %v573 = vunpack.c.h.b16 %v397
        %v574 = vunpack.c.l.b16 %v398
        %v575 = vunpack.c.h.b16 %v398
        %v576 = vunpack.c.l.b16 %v399
        %v577 = vunpack.c.h.b16 %v399
        %v578 = vunpack.c.l.b16 %v400
        %v579 = vunpack.c.h.b16 %v400
        %v580 = vunpack.c.l.b16 %v401
        %v581 = vunpack.c.h.b16 %v401
        %v582 = vunpack.c.l.b16 %v402
        %v583 = vunpack.c.h.b16 %v402
        %v584 = vunpack.c.l.b16 %v403
        %v585 = vunpack.c.h.b16 %v403
        %v586 = vunpack.c.l.b16 %v404
        %v587 = vunpack.c.h.b16 %v404
        %v588 = vunpack.c.l.b16 %v405
        %v589 = vunpack.c.h.b16 %v405
        %v590 = vunpack.c.l.b16 %v406
        %v591 = vunpack.c.h.b16 %v406
        %v592 = vunpack.c.l.b16 %v407
        %v593 = vunpack.c.h.b16 %v407
        %v594 = vunpack.c.l.b16 %v408
        %v595 = vunpack.c.h.b16 %v408
        %v596 = vunpack.c.l.b16 %v409
        %v597 = vunpack.c.h.b16 %v409
        %v598 = vunpack.c.l.b16 %v410
        %v599 = vunpack.c.h.b16 %v410
        %v600 = vunpack.c.l.b16 %v411
        %v601 = vunpack.c.h.b16 %v411
        %v602 = vunpack.c.l.b16 %v412
        %v603 = vunpack.c.h.b16 %v412
        %v604 = vunpack.c.l.b16 %v413
        %v605 = vunpack.c.h.b16 %v413
        %v606 = vpack.c.b16 %v482, %v478
        %v607 = vpack.c.b16 %v483, %v479
        %v608 = vpack.c.b16 %v484, %v480
        %v609 = vpack.c.b16 %v485, %v481
        %v610 = vpack.c.b16 %v490, %v486
        %v611 = vpack.c.b16 %v491, %v487
        %v612 = vpack.c.b16 %v492, %v488
        %v613 = vpack.c.b16 %v493, %v489
        %v614 = vpack.c.b16 %v498, %v494
        %v615 = vpack.c.b16 %v499, %v495
        %v616 = vpack.c.b16 %v500, %v496
        %v617 = vpack.c.b16 %v501, %v497
        %v618 = vpack.c.b16 %v506, %v502
        %v619 = vpack.c.b16 %v507, %v503
        %v620 = vpack.c.b16 %v508, %v504
        %v621 = vpack.c.b16 %v509, %v505
        %v622 = vpack.c.b16 %v514, %v510
        %v623 = vpack.c.b16 %v515, %v511
        %v624 = vpack.c.b16 %v516, %v512
        %v625 = vpack.c.b16 %v517, %v513
        %v626 = vpack.c.b16 %v522, %v518
        %v627 = vpack.c.b16 %v523, %v519
        %v628 = vpack.c.b16 %v524, %v520
        %v629 = vpack.c.b16 %v525, %v521
        %v630 = vpack.c.b16 %v530, %v526
        %v631 = vpack.c.b16 %v531, %v527
        %v632 = vpack.c.b16 %v532, %v528
        %v633 = vpack.c.b16 %v533, %v529
        %v634 = vpack.c.b16 %v538, %v534
        %v635 = vpack.c.b16 %v539, %v535
        %v636 = vpack.c.b16 %v540, %v536
        %v637 = vpack.c.b16 %v541, %v537
        %v638 = vpack.c.b16 %v546, %v542
        %v639 = vpack.c.b16 %v547, %v543
        %v640 = vpack.c.b16 %v548, %v544
        %v641 = vpack.c.b16 %v549, %v545
        %v642 = vpack.c.b16 %v554, %v550
        %v643 = vpack.c.b16 %v555, %v551
        %v644 = vpack.c.b16 %v556, %v552
        %v645 = vpack.c.b16 %v557, %v553
        %v646 = vpack.c.b16 %v562, %v558
        %v647 = vpack.c.b16 %v563, %v559
        %v648 = vpack.c.b16 %v564, %v560
        %v649 = vpack.c.b16 %v565, %v561
        %v650 = vpack.c.b16 %v570, %v566
        %v651 = vpack.c.b16 %v571, %v567
        %v652 = vpack.c.b16 %v572, %v568
        %v653 = vpack.c.b16 %v573, %v569
        %v654 = vpack.c.b16 %v578, %v574
        %v655 = vpack.c.b16 %v579, %v575
        %v656 = vpack.c.b16 %v580, %v576
        %v657 = vpack.c.b16 %v581, %v577
        %v658 = vpack.c.b16 %v586, %v582
        %v659 = vpack.c.b16 %v587, %v583
        %v660 = vpack.c.b16 %v588, %v584
        %v661 = vpack.c.b16 %v589, %v585
        %v662 = vpack.c.b16 %v594, %v590
        %v663 = vpack.c.b16 %v595, %v591
        %v664 = vpack.c.b16 %v596, %v592
        %v665 = vpack.c.b16 %v597, %v593
        %v666 = vpack.c.b16 %v602, %v598
        %v667 = vpack.c.b16 %v603, %v599
        %v668 = vpack.c.b16 %v604, %v600
        %v669 = vpack.c.b16 %v605, %v601
        %v798 = vunpack.c.l.b16 %v254
        %v799 = vunpack.c.l.b16 %v255
        %v800 = vunpack.c.l.b16 %v256
        %v801 = vunpack.c.l.b16 %v257
        %v802 = vunpack.c.l.b16 %v258
        %v803 = vunpack.c.l.b16 %v259
        %v804 = vunpack.c.l.b16 %v260
        %v805 = vunpack.c.l.b16 %v261
        %v806 = vunpack.c.l.b16 %v262
        %v807 = vunpack.c.l.b16 %v263
        %v808 = vunpack.c.l.b16 %v264
        %v809 = vunpack.c.l.b16 %v265
        %v810 = vunpack.c.l.b16 %v266
        %v811 = vunpack.c.l.b16 %v267
        %v812 = vunpack.c.l.b16 %v268
        %v813 = vunpack.c.l.b16 %v269
        %v814 = vunpack.c.l.b16 %v270
        %v815 = vunpack.c.l.b16 %v271
        %v816 = vunpack.c.l.b16 %v272
        %v817 = vunpack.c.l.b16 %v273
        %v818 = vunpack.c.l.b16 %v274
        %v819 = vunpack.c.l.b16 %v275
        %v820 = vunpack.c.l.b16 %v276
        %v821 = vunpack.c.l.b16 %v277
        %v822 = vunpack.c.l.b16 %v278
        %v823 = vunpack.c.l.b16 %v279
        %v824 = vunpack.c.l.b16 %v280
        %v825 = vunpack.c.l.b16 %v281
        %v826 = vunpack.c.l.b16 %v282
        %v827 = vunpack.c.l.b16 %v283
        %v828 = vunpack.c.l.b16 %v284
        %v829 = vunpack.c.l.b16 %v285
        %v830 = vunpack.c.l.b16 %v286
        %v831 = vunpack.c.l.b16 %v287
        %v832 = vunpack.c.l.b16 %v288
        %v833 = vunpack.c.l.b16 %v289
        %v834 = vunpack.c.l.b16 %v290
        %v835 = vunpack.c.l.b16 %v291
        %v836 = vunpack.c.l.b16 %v292
        %v837 = vunpack.c.l.b16 %v293
        %v838 = vunpack.c.l.b16 %v294
        %v839 = vunpack.c.l.b16 %v295
        %v840 = vunpack.c.l.b16 %v296
        %v841 = vunpack.c.l.b16 %v297
        %v842 = vunpack.c.l.b16 %v298
        %v843 = vunpack.c.l.b16 %v299
        %v844 = vunpack.c.l.b16 %v300
        %v845 = vunpack.c.l.b16 %v301
        %v846 = vunpack.c.l.b16 %v302
        %v847 = vunpack.c.l.b16 %v303
        %v848 = vunpack.c.l.b16 %v304
        %v849 = vunpack.c.l.b16 %v305
        %v850 = vunpack.c.l.b16 %v306
        %v851 = vunpack.c.l.b16 %v307
        %v852 = vunpack.c.l.b16 %v308
        %v853 = vunpack.c.l.b16 %v309
        %v854 = vunpack.c.l.b16 %v310
        %v855 = vunpack.c.l.b16 %v311
        %v856 = vunpack.c.l.b16 %v312
        %v857 = vunpack.c.l.b16 %v313
        %v858 = vunpack.c.l.b16 %v314
        %v859 = vunpack.c.l.b16 %v315
        %v860 = vunpack.c.l.b16 %v316
        %v861 = vunpack.c.l.b16 %v317
        %v862 = vpack.c.b16 %v799, %v798
        %v863 = vpack.c.b16 %v801, %v800
        %v864 = vpack.c.b16 %v803, %v802
        %v865 = vpack.c.b16 %v805, %v804
        %v866 = vpack.c.b16 %v807, %v806
        %v867 = vpack.c.b16 %v809, %v808
        %v868 = vpack.c.b16 %v811, %v810
        %v869 = vpack.c.b16 %v813, %v812
        %v870 = vpack.c.b16 %v815, %v814
        %v871 = vpack.c.b16 %v817, %v816
        %v872 = vpack.c.b16 %v819, %v818
        %v873 = vpack.c.b16 %v821, %v820
        %v874 = vpack.c.b16 %v823, %v822
        %v875 = vpack.c.b16 %v825, %v824
        %v876 = vpack.c.b16 %v827, %v826
        %v877 = vpack.c.b16 %v829, %v828
        %v878 = vpack.c.b16 %v831, %v830
        %v879 = vpack.c.b16 %v833, %v832
        %v880 = vpack.c.b16 %v835, %v834
        %v881 = vpack.c.b16 %v837, %v836
        %v882 = vpack.c.b16 %v839, %v838
        %v883 = vpack.c.b16 %v841, %v840
        %v884 = vpack.c.b16 %v843, %v842
        %v885 = vpack.c.b16 %v845, %v844
        %v886 = vpack.c.b16 %v847, %v846
        %v887 = vpack.c.b16 %v849, %v848
        %v888 = vpack.c.b16 %v851, %v850
        %v889 = vpack.c.b16 %v853, %v852
        %v890 = vpack.c.b16 %v855, %v854
        %v891 = vpack.c.b16 %v857, %v856
        %v892 = vpack.c.b16 %v859, %v858
        %v893 = vpack.c.b16 %v861, %v860
        %926 = vmatpush.bf16.msra.mxu0 %v869
        %927 = vmatpush.bf16.msra.mxu0 %v868
        %928 = vmatpush.bf16.msra.mxu0 %v867
        %929 = vmatpush.bf16.msra.mxu0 %v866
        %930 = vmatpush.bf16.msra.mxu0 %v865
        %931 = vmatpush.bf16.msra.mxu0 %v864
        %932 = vmatpush.bf16.msra.mxu0 %v863
        %933 = vmatpush.bf16.msra.mxu0 %v862
        %934 = vmatmul.bf16.gmra.mxu0 %v606
        %v935 = vpop.f32.mrf.mxu0
        %v936 = vadd.f32 0.0, %v935
        %v937 = vpop.f32.mrf.mxu0
        %v938 = vadd.f32 0.0, %v937
        %939 = vmatmul.bf16.gmra.mxu0 %v610
        %v940 = vpop.f32.mrf.mxu0
        %v941 = vadd.f32 0.0, %v940
        %v942 = vpop.f32.mrf.mxu0
        %v943 = vadd.f32 0.0, %v942
        %944 = vmatmul.bf16.gmra.mxu0 %v614
        %v945 = vpop.f32.mrf.mxu0
        %v946 = vadd.f32 0.0, %v945
        %v947 = vpop.f32.mrf.mxu0
        %v948 = vadd.f32 0.0, %v947
        %949 = vmatmul.bf16.gmra.mxu0 %v618
        %v950 = vpop.f32.mrf.mxu0
        %v951 = vadd.f32 0.0, %v950
        %v952 = vpop.f32.mrf.mxu0
        %v953 = vadd.f32 0.0, %v952
        %954 = vmatmul.bf16.gmra.mxu0 %v622
        %v955 = vpop.f32.mrf.mxu0
        %v956 = vadd.f32 0.0, %v955
        %v957 = vpop.f32.mrf.mxu0
        %v958 = vadd.f32 0.0, %v957
        %959 = vmatmul.bf16.gmra.mxu0 %v626
        %v960 = vpop.f32.mrf.mxu0
        %v961 = vadd.f32 0.0, %v960
        %v962 = vpop.f32.mrf.mxu0
        %v963 = vadd.f32 0.0, %v962
        %964 = vmatmul.bf16.gmra.mxu0 %v630
        %v965 = vpop.f32.mrf.mxu0
        %v966 = vadd.f32 0.0, %v965
        %v967 = vpop.f32.mrf.mxu0
        %v968 = vadd.f32 0.0, %v967
        %969 = vmatmul.bf16.gmra.mxu0 %v634
        %v970 = vpop.f32.mrf.mxu0
        %v971 = vadd.f32 0.0, %v970
        %v972 = vpop.f32.mrf.mxu0
        %v973 = vadd.f32 0.0, %v972
        %974 = vmatmul.bf16.gmra.mxu0 %v638
        %v975 = vpop.f32.mrf.mxu0
        %v976 = vadd.f32 0.0, %v975
        %v977 = vpop.f32.mrf.mxu0
        %v978 = vadd.f32 0.0, %v977
        %979 = vmatmul.bf16.gmra.mxu0 %v642
        %v980 = vpop.f32.mrf.mxu0
        %v981 = vadd.f32 0.0, %v980
        %v982 = vpop.f32.mrf.mxu0
        %v983 = vadd.f32 0.0, %v982
        %984 = vmatmul.bf16.gmra.mxu0 %v646
        %v985 = vpop.f32.mrf.mxu0
        %v986 = vadd.f32 0.0, %v985
        %v987 = vpop.f32.mrf.mxu0
        %v988 = vadd.f32 0.0, %v987
        %989 = vmatmul.bf16.gmra.mxu0 %v650
        %v990 = vpop.f32.mrf.mxu0
        %v991 = vadd.f32 0.0, %v990
        %v992 = vpop.f32.mrf.mxu0
        %v993 = vadd.f32 0.0, %v992
        %994 = vmatmul.bf16.gmra.mxu0 %v654
        %v995 = vpop.f32.mrf.mxu0
        %v996 = vadd.f32 0.0, %v995
        %v997 = vpop.f32.mrf.mxu0
        %v998 = vadd.f32 0.0, %v997
        %999 = vmatmul.bf16.gmra.mxu0 %v658
        %v1000 = vpop.f32.mrf.mxu0
        %v1001 = vadd.f32 0.0, %v1000
        %v1002 = vpop.f32.mrf.mxu0
        %v1003 = vadd.f32 0.0, %v1002
        %1004 = vmatmul.bf16.gmra.mxu0 %v662
        %v1005 = vpop.f32.mrf.mxu0
        %v1006 = vadd.f32 0.0, %v1005
        %v1007 = vpop.f32.mrf.mxu0
        %v1008 = vadd.f32 0.0, %v1007
        %1009 = vmatmul.bf16.gmra.mxu0 %v666
        %v1010 = vpop.f32.mrf.mxu0
        %v1011 = vadd.f32 0.0, %v1010
        %v1012 = vpop.f32.mrf.mxu0
        %v1013 = vadd.f32 0.0, %v1012
        %1014 = vdwg.mxu0
        %1015 = vmatpush.bf16.msra.mxu0 %v877
        %1016 = vmatpush.bf16.msra.mxu0 %v876
        %1017 = vmatpush.bf16.msra.mxu0 %v875
        %1018 = vmatpush.bf16.msra.mxu0 %v874
        %1019 = vmatpush.bf16.msra.mxu0 %v873
        %1020 = vmatpush.bf16.msra.mxu0 %v872
        %1021 = vmatpush.bf16.msra.mxu0 %v871
        %1022 = vmatpush.bf16.msra.mxu0 %v870
        %1023 = vmatmul.bf16.gmra.mxu0 %v607
        %v1024 = vpop.f32.mrf.mxu0
        %v1025 = vadd.f32 %v936, %v1024
        %v1026 = vpop.f32.mrf.mxu0
        %v1027 = vadd.f32 %v938, %v1026
        %1028 = vmatmul.bf16.gmra.mxu0 %v611
        %v1029 = vpop.f32.mrf.mxu0
        %v1030 = vadd.f32 %v941, %v1029
        %v1031 = vpop.f32.mrf.mxu0
        %v1032 = vadd.f32 %v943, %v1031
        %1033 = vmatmul.bf16.gmra.mxu0 %v615
        %v1034 = vpop.f32.mrf.mxu0
        %v1035 = vadd.f32 %v946, %v1034
        %v1036 = vpop.f32.mrf.mxu0
        %v1037 = vadd.f32 %v948, %v1036
        %1038 = vmatmul.bf16.gmra.mxu0 %v619
        %v1039 = vpop.f32.mrf.mxu0
        %v1040 = vadd.f32 %v951, %v1039
        %v1041 = vpop.f32.mrf.mxu0
        %v1042 = vadd.f32 %v953, %v1041
        %1043 = vmatmul.bf16.gmra.mxu0 %v623
        %v1044 = vpop.f32.mrf.mxu0
        %v1045 = vadd.f32 %v956, %v1044
        %v1046 = vpop.f32.mrf.mxu0
        %v1047 = vadd.f32 %v958, %v1046
        %1048 = vmatmul.bf16.gmra.mxu0 %v627
        %v1049 = vpop.f32.mrf.mxu0
        %v1050 = vadd.f32 %v961, %v1049
        %v1051 = vpop.f32.mrf.mxu0
        %v1052 = vadd.f32 %v963, %v1051
        %1053 = vmatmul.bf16.gmra.mxu0 %v631
        %v1054 = vpop.f32.mrf.mxu0
        %v1055 = vadd.f32 %v966, %v1054
        %v1056 = vpop.f32.mrf.mxu0
        %v1057 = vadd.f32 %v968, %v1056
        %1058 = vmatmul.bf16.gmra.mxu0 %v635
        %v1059 = vpop.f32.mrf.mxu0
        %v1060 = vadd.f32 %v971, %v1059
        %v1061 = vpop.f32.mrf.mxu0
        %v1062 = vadd.f32 %v973, %v1061
        %1063 = vmatmul.bf16.gmra.mxu0 %v639
        %v1064 = vpop.f32.mrf.mxu0
        %v1065 = vadd.f32 %v976, %v1064
        %v1066 = vpop.f32.mrf.mxu0
        %v1067 = vadd.f32 %v978, %v1066
        %1068 = vmatmul.bf16.gmra.mxu0 %v643
        %v1069 = vpop.f32.mrf.mxu0
        %v1070 = vadd.f32 %v981, %v1069
        %v1071 = vpop.f32.mrf.mxu0
        %v1072 = vadd.f32 %v983, %v1071
        %1073 = vmatmul.bf16.gmra.mxu0 %v647
        %v1074 = vpop.f32.mrf.mxu0
        %v1075 = vadd.f32 %v986, %v1074
        %v1076 = vpop.f32.mrf.mxu0
        %v1077 = vadd.f32 %v988, %v1076
        %1078 = vmatmul.bf16.gmra.mxu0 %v651
        %v1079 = vpop.f32.mrf.mxu0
        %v1080 = vadd.f32 %v991, %v1079
        %v1081 = vpop.f32.mrf.mxu0
        %v1082 = vadd.f32 %v993, %v1081
        %1083 = vmatmul.bf16.gmra.mxu0 %v655
        %v1084 = vpop.f32.mrf.mxu0
        %v1085 = vadd.f32 %v996, %v1084
        %v1086 = vpop.f32.mrf.mxu0
        %v1087 = vadd.f32 %v998, %v1086
        %1088 = vmatmul.bf16.gmra.mxu0 %v659
        %v1089 = vpop.f32.mrf.mxu0
        %v1090 = vadd.f32 %v1001, %v1089
        %v1091 = vpop.f32.mrf.mxu0
        %v1092 = vadd.f32 %v1003, %v1091
        %1093 = vmatmul.bf16.gmra.mxu0 %v663
        %v1094 = vpop.f32.mrf.mxu0
        %v1095 = vadd.f32 %v1006, %v1094
        %v1096 = vpop.f32.mrf.mxu0
        %v1097 = vadd.f32 %v1008, %v1096
        %1098 = vmatmul.bf16.gmra.mxu0 %v667
        %v1099 = vpop.f32.mrf.mxu0
        %v1100 = vadd.f32 %v1011, %v1099
        %v1101 = vpop.f32.mrf.mxu0
        %v1102 = vadd.f32 %v1013, %v1101
        %1103 = vdwg.mxu0
        %1104 = vmatpush.bf16.msra.mxu0 %v885
        %1105 = vmatpush.bf16.msra.mxu0 %v884
        %1106 = vmatpush.bf16.msra.mxu0 %v883
        %1107 = vmatpush.bf16.msra.mxu0 %v882
        %1108 = vmatpush.bf16.msra.mxu0 %v881
        %1109 = vmatpush.bf16.msra.mxu0 %v880
        %1110 = vmatpush.bf16.msra.mxu0 %v879
        %1111 = vmatpush.bf16.msra.mxu0 %v878
        %1112 = vmatmul.bf16.gmra.mxu0 %v608
        %v1113 = vpop.f32.mrf.mxu0
        %v1114 = vadd.f32 %v1025, %v1113
        %v1115 = vpop.f32.mrf.mxu0
        %v1116 = vadd.f32 %v1027, %v1115
        %1117 = vmatmul.bf16.gmra.mxu0 %v612
        %v1118 = vpop.f32.mrf.mxu0
        %v1119 = vadd.f32 %v1030, %v1118
        %v1120 = vpop.f32.mrf.mxu0
        %v1121 = vadd.f32 %v1032, %v1120
        %1122 = vmatmul.bf16.gmra.mxu0 %v616
        %v1123 = vpop.f32.mrf.mxu0
        %v1124 = vadd.f32 %v1035, %v1123
        %v1125 = vpop.f32.mrf.mxu0
        %v1126 = vadd.f32 %v1037, %v1125
        %1127 = vmatmul.bf16.gmra.mxu0 %v620
        %v1128 = vpop.f32.mrf.mxu0
        %v1129 = vadd.f32 %v1040, %v1128
        %v1130 = vpop.f32.mrf.mxu0
        %v1131 = vadd.f32 %v1042, %v1130
        %1132 = vmatmul.bf16.gmra.mxu0 %v624
        %v1133 = vpop.f32.mrf.mxu0
        %v1134 = vadd.f32 %v1045, %v1133
        %v1135 = vpop.f32.mrf.mxu0
        %v1136 = vadd.f32 %v1047, %v1135
        %1137 = vmatmul.bf16.gmra.mxu0 %v628
        %v1138 = vpop.f32.mrf.mxu0
        %v1139 = vadd.f32 %v1050, %v1138
        %v1140 = vpop.f32.mrf.mxu0
        %v1141 = vadd.f32 %v1052, %v1140
        %1142 = vmatmul.bf16.gmra.mxu0 %v632
        %v1143 = vpop.f32.mrf.mxu0
        %v1144 = vadd.f32 %v1055, %v1143
        %v1145 = vpop.f32.mrf.mxu0
        %v1146 = vadd.f32 %v1057, %v1145
        %1147 = vmatmul.bf16.gmra.mxu0 %v636
        %v1148 = vpop.f32.mrf.mxu0
        %v1149 = vadd.f32 %v1060, %v1148
        %v1150 = vpop.f32.mrf.mxu0
        %v1151 = vadd.f32 %v1062, %v1150
        %1152 = vmatmul.bf16.gmra.mxu0 %v640
        %v1153 = vpop.f32.mrf.mxu0
        %v1154 = vadd.f32 %v1065, %v1153
        %v1155 = vpop.f32.mrf.mxu0
        %v1156 = vadd.f32 %v1067, %v1155
        %1157 = vmatmul.bf16.gmra.mxu0 %v644
        %v1158 = vpop.f32.mrf.mxu0
        %v1159 = vadd.f32 %v1070, %v1158
        %v1160 = vpop.f32.mrf.mxu0
        %v1161 = vadd.f32 %v1072, %v1160
        %1162 = vmatmul.bf16.gmra.mxu0 %v648
        %v1163 = vpop.f32.mrf.mxu0
        %v1164 = vadd.f32 %v1075, %v1163
        %v1165 = vpop.f32.mrf.mxu0
        %v1166 = vadd.f32 %v1077, %v1165
        %1167 = vmatmul.bf16.gmra.mxu0 %v652
        %v1168 = vpop.f32.mrf.mxu0
        %v1169 = vadd.f32 %v1080, %v1168
        %v1170 = vpop.f32.mrf.mxu0
        %v1171 = vadd.f32 %v1082, %v1170
        %1172 = vmatmul.bf16.gmra.mxu0 %v656
        %v1173 = vpop.f32.mrf.mxu0
        %v1174 = vadd.f32 %v1085, %v1173
        %v1175 = vpop.f32.mrf.mxu0
        %v1176 = vadd.f32 %v1087, %v1175
        %1177 = vmatmul.bf16.gmra.mxu0 %v660
        %v1178 = vpop.f32.mrf.mxu0
        %v1179 = vadd.f32 %v1090, %v1178
        %v1180 = vpop.f32.mrf.mxu0
        %v1181 = vadd.f32 %v1092, %v1180
        %1182 = vmatmul.bf16.gmra.mxu0 %v664
        %v1183 = vpop.f32.mrf.mxu0
        %v1184 = vadd.f32 %v1095, %v1183
        %v1185 = vpop.f32.mrf.mxu0
        %v1186 = vadd.f32 %v1097, %v1185
        %1187 = vmatmul.bf16.gmra.mxu0 %v668
        %v1188 = vpop.f32.mrf.mxu0
        %v1189 = vadd.f32 %v1100, %v1188
        %v1190 = vpop.f32.mrf.mxu0
        %v1191 = vadd.f32 %v1102, %v1190
        %1192 = vdwg.mxu0
        %1193 = vmatpush.bf16.msra.mxu0 %v893
        %1194 = vmatpush.bf16.msra.mxu0 %v892
        %1195 = vmatpush.bf16.msra.mxu0 %v891
        %1196 = vmatpush.bf16.msra.mxu0 %v890
        %1197 = vmatpush.bf16.msra.mxu0 %v889
        %1198 = vmatpush.bf16.msra.mxu0 %v888
        %1199 = vmatpush.bf16.msra.mxu0 %v887
        %1200 = vmatpush.bf16.msra.mxu0 %v886
        %1201 = vmatmul.bf16.gmra.mxu0 %v609
        %v1202 = vpop.f32.mrf.mxu0
        %v1203 = vadd.f32 %v1114, %v1202
        %v1204 = vpop.f32.mrf.mxu0
        %v1205 = vadd.f32 %v1116, %v1204
        %1206 = vmatmul.bf16.gmra.mxu0 %v613
        %v1207 = vpop.f32.mrf.mxu0
        %v1208 = vadd.f32 %v1119, %v1207
        %v1209 = vpop.f32.mrf.mxu0
        %v1210 = vadd.f32 %v1121, %v1209
        %1211 = vmatmul.bf16.gmra.mxu0 %v617
        %v1212 = vpop.f32.mrf.mxu0
        %v1213 = vadd.f32 %v1124, %v1212
        %v1214 = vpop.f32.mrf.mxu0
        %v1215 = vadd.f32 %v1126, %v1214
        %1216 = vmatmul.bf16.gmra.mxu0 %v621
        %v1217 = vpop.f32.mrf.mxu0
        %v1218 = vadd.f32 %v1129, %v1217
        %v1219 = vpop.f32.mrf.mxu0
        %v1220 = vadd.f32 %v1131, %v1219
        %1221 = vmatmul.bf16.gmra.mxu0 %v625
        %v1222 = vpop.f32.mrf.mxu0
        %v1223 = vadd.f32 %v1134, %v1222
        %v1224 = vpop.f32.mrf.mxu0
        %v1225 = vadd.f32 %v1136, %v1224
        %1226 = vmatmul.bf16.gmra.mxu0 %v629
        %v1227 = vpop.f32.mrf.mxu0
        %v1228 = vadd.f32 %v1139, %v1227
        %v1229 = vpop.f32.mrf.mxu0
        %v1230 = vadd.f32 %v1141, %v1229
        %1231 = vmatmul.bf16.gmra.mxu0 %v633
        %v1232 = vpop.f32.mrf.mxu0
        %v1233 = vadd.f32 %v1144, %v1232
        %v1234 = vpop.f32.mrf.mxu0
        %v1235 = vadd.f32 %v1146, %v1234
        %1236 = vmatmul.bf16.gmra.mxu0 %v637
        %v1237 = vpop.f32.mrf.mxu0
        %v1238 = vadd.f32 %v1149, %v1237
        %v1239 = vpop.f32.mrf.mxu0
        %v1240 = vadd.f32 %v1151, %v1239
        %1241 = vmatmul.bf16.gmra.mxu0 %v641
        %v1242 = vpop.f32.mrf.mxu0
        %v1243 = vadd.f32 %v1154, %v1242
        %v1244 = vpop.f32.mrf.mxu0
        %v1245 = vadd.f32 %v1156, %v1244
        %1246 = vmatmul.bf16.gmra.mxu0 %v645
        %v1247 = vpop.f32.mrf.mxu0
        %v1248 = vadd.f32 %v1159, %v1247
        %v1249 = vpop.f32.mrf.mxu0
        %v1250 = vadd.f32 %v1161, %v1249
        %1251 = vmatmul.bf16.gmra.mxu0 %v649
        %v1252 = vpop.f32.mrf.mxu0
        %v1253 = vadd.f32 %v1164, %v1252
        %v1254 = vpop.f32.mrf.mxu0
        %v1255 = vadd.f32 %v1166, %v1254
        %1256 = vmatmul.bf16.gmra.mxu0 %v653
        %v1257 = vpop.f32.mrf.mxu0
        %v1258 = vadd.f32 %v1169, %v1257
        %v1259 = vpop.f32.mrf.mxu0
        %v1260 = vadd.f32 %v1171, %v1259
        %1261 = vmatmul.bf16.gmra.mxu0 %v657
        %v1262 = vpop.f32.mrf.mxu0
        %v1263 = vadd.f32 %v1174, %v1262
        %v1264 = vpop.f32.mrf.mxu0
        %v1265 = vadd.f32 %v1176, %v1264
        %1266 = vmatmul.bf16.gmra.mxu0 %v661
        %v1267 = vpop.f32.mrf.mxu0
        %v1268 = vadd.f32 %v1179, %v1267
        %v1269 = vpop.f32.mrf.mxu0
        %v1270 = vadd.f32 %v1181, %v1269
        %1271 = vmatmul.bf16.gmra.mxu0 %v665
        %v1272 = vpop.f32.mrf.mxu0
        %v1273 = vadd.f32 %v1184, %v1272
        %v1274 = vpop.f32.mrf.mxu0
        %v1275 = vadd.f32 %v1186, %v1274
        %1276 = vmatmul.bf16.gmra.mxu0 %v669
        %v1277 = vpop.f32.mrf.mxu0
        %v1278 = vadd.f32 %v1189, %v1277
        %v1279 = vpop.f32.mrf.mxu0
        %v1280 = vadd.f32 %v1191, %v1279
        %1281 = vdwg.mxu0
        %v1282 = vadd.f32 %v318, %v1203
        %v1283 = vadd.f32 %v319, %v1205
        %v1284 = vadd.f32 %v320, %v1208
        %v1285 = vadd.f32 %v321, %v1210
        %v1286 = vadd.f32 %v322, %v1213
        %v1287 = vadd.f32 %v323, %v1215
        %v1288 = vadd.f32 %v324, %v1218
        %v1289 = vadd.f32 %v325, %v1220
        %v1290 = vadd.f32 %v326, %v1223
        %v1291 = vadd.f32 %v327, %v1225
        %v1292 = vadd.f32 %v328, %v1228
        %v1293 = vadd.f32 %v329, %v1230
        %v1294 = vadd.f32 %v330, %v1233
        %v1295 = vadd.f32 %v331, %v1235
        %v1296 = vadd.f32 %v332, %v1238
        %v1297 = vadd.f32 %v333, %v1240
        %v1298 = vadd.f32 %v334, %v1243
        %v1299 = vadd.f32 %v335, %v1245
        %v1300 = vadd.f32 %v336, %v1248
        %v1301 = vadd.f32 %v337, %v1250
        %v1302 = vadd.f32 %v338, %v1253
        %v1303 = vadd.f32 %v339, %v1255
        %v1304 = vadd.f32 %v340, %v1258
        %v1305 = vadd.f32 %v341, %v1260
        %v1306 = vadd.f32 %v342, %v1263
        %v1307 = vadd.f32 %v343, %v1265
        %v1308 = vadd.f32 %v344, %v1268
        %v1309 = vadd.f32 %v345, %v1270
        %v1310 = vadd.f32 %v346, %v1273
        %v1311 = vadd.f32 %v347, %v1275
        %v1312 = vadd.f32 %v348, %v1278
        %v1313 = vadd.f32 %v349, %v1280
        %1314 = vst [vmem:[#allocation2] sm:$0xff] %v1282
        %1315 = vst [vmem:[#allocation2 + $0x8] sm:$0xff] %v1283
        %1316 = vst [vmem:[#allocation2 + $0x10] sm:$0xff] %v1284
        %1317 = vst [vmem:[#allocation2 + $0x18] sm:$0xff] %v1285
        %1318 = vst [vmem:[#allocation2 + $0x20] sm:$0xff] %v1286
        %1319 = vst [vmem:[#allocation2 + $0x28] sm:$0xff] %v1287
        %1320 = vst [vmem:[#allocation2 + $0x30] sm:$0xff] %v1288
        %1321 = vst [vmem:[#allocation2 + $0x38] sm:$0xff] %v1289
        %1322 = vst [vmem:[#allocation2 + $0x40] sm:$0xff] %v1290
        %1323 = vst [vmem:[#allocation2 + $0x48] sm:$0xff] %v1291
        %1324 = vst [vmem:[#allocation2 + $0x50] sm:$0xff] %v1292
        %1325 = vst [vmem:[#allocation2 + $0x58] sm:$0xff] %v1293
        %1326 = vst [vmem:[#allocation2 + $0x60] sm:$0xff] %v1294
        %1327 = vst [vmem:[#allocation2 + $0x68] sm:$0xff] %v1295
        %1328 = vst [vmem:[#allocation2 + $0x70] sm:$0xff] %v1296
        %1329 = vst [vmem:[#allocation2 + $0x78] sm:$0xff] %v1297
        %1330 = vst [vmem:[#allocation2 + $0x80] sm:$0xff] %v1298
        %1331 = vst [vmem:[#allocation2 + $0x88] sm:$0xff] %v1299
        %1332 = vst [vmem:[#allocation2 + $0x90] sm:$0xff] %v1300
        %1333 = vst [vmem:[#allocation2 + $0x98] sm:$0xff] %v1301
        %1334 = vst [vmem:[#allocation2 + $0xa0] sm:$0xff] %v1302
        %1335 = vst [vmem:[#allocation2 + $0xa8] sm:$0xff] %v1303
        %1336 = vst [vmem:[#allocation2 + $0xb0] sm:$0xff] %v1304
        %1337 = vst [vmem:[#allocation2 + $0xb8] sm:$0xff] %v1305
        %1338 = vst [vmem:[#allocation2 + $0xc0] sm:$0xff] %v1306
        %1339 = vst [vmem:[#allocation2 + $0xc8] sm:$0xff] %v1307
        %1340 = vst [vmem:[#allocation2 + $0xd0] sm:$0xff] %v1308
        %1341 = vst [vmem:[#allocation2 + $0xd8] sm:$0xff] %v1309
        %1342 = vst [vmem:[#allocation2 + $0xe0] sm:$0xff] %v1310
        %1343 = vst [vmem:[#allocation2 + $0xe8] sm:$0xff] %v1311
        %1344 = vst [vmem:[#allocation2 + $0xf0] sm:$0xff] %v1312
        %1345 = vst [vmem:[#allocation2 + $0xf8] sm:$0xff] %v1313
        // Predicated region
        $region41: #{gcn_net_forward.2} parent=31 // pred_check
          %p1346 = pneg %p213
        $region42: #{gcn_net_forward.2} parent=31 // pred_check_branch
          %1348 = sbr.rel (%p1346) target = $region44
        $region43: #{gcn_net_forward.2} parent=31 // pred_region
          %v1349 = vld [vmem:[#allocation2] sm:$0xff]
          %v1350 = vld [vmem:[#allocation2 + $0x8] sm:$0xff]
          %v1351 = vld [vmem:[#allocation2 + $0x10] sm:$0xff]
          %v1352 = vld [vmem:[#allocation2 + $0x18] sm:$0xff]
          %v1353 = vld [vmem:[#allocation2 + $0x20] sm:$0xff]
          %v1354 = vld [vmem:[#allocation2 + $0x28] sm:$0xff]
          %v1355 = vld [vmem:[#allocation2 + $0x30] sm:$0xff]
          %v1356 = vld [vmem:[#allocation2 + $0x38] sm:$0xff]
          %v1357 = vld [vmem:[#allocation2 + $0x40] sm:$0xff]
          %v1358 = vld [vmem:[#allocation2 + $0x48] sm:$0xff]
          %v1359 = vld [vmem:[#allocation2 + $0x50] sm:$0xff]
          %v1360 = vld [vmem:[#allocation2 + $0x58] sm:$0xff]
          %v1361 = vld [vmem:[#allocation2 + $0x60] sm:$0xff]
          %v1362 = vld [vmem:[#allocation2 + $0x68] sm:$0xff]
          %v1363 = vld [vmem:[#allocation2 + $0x70] sm:$0xff]
          %v1364 = vld [vmem:[#allocation2 + $0x78] sm:$0xff]
          %v1365 = vld [vmem:[#allocation2 + $0x80] sm:$0xff]
          %v1366 = vld [vmem:[#allocation2 + $0x88] sm:$0xff]
          %v1367 = vld [vmem:[#allocation2 + $0x90] sm:$0xff]
          %v1368 = vld [vmem:[#allocation2 + $0x98] sm:$0xff]
          %v1369 = vld [vmem:[#allocation2 + $0xa0] sm:$0xff]
          %v1370 = vld [vmem:[#allocation2 + $0xa8] sm:$0xff]
          %v1371 = vld [vmem:[#allocation2 + $0xb0] sm:$0xff]
          %v1372 = vld [vmem:[#allocation2 + $0xb8] sm:$0xff]
          %v1373 = vld [vmem:[#allocation2 + $0xc0] sm:$0xff]
          %v1374 = vld [vmem:[#allocation2 + $0xc8] sm:$0xff]
          %v1375 = vld [vmem:[#allocation2 + $0xd0] sm:$0xff]
          %v1376 = vld [vmem:[#allocation2 + $0xd8] sm:$0xff]
          %v1377 = vld [vmem:[#allocation2 + $0xe0] sm:$0xff]
          %v1378 = vld [vmem:[#allocation2 + $0xe8] sm:$0xff]
          %v1379 = vld [vmem:[#allocation2 + $0xf0] sm:$0xff]
          %v1380 = vld [vmem:[#allocation2 + $0xf8] sm:$0xff]
          %v1381 = vld [vmem:[%s2] sm:$0xff]
          %v1382 = vld [vmem:[%s2 + $0x8] sm:$0xff]
          %v1383 = vld [vmem:[%s2 + $0x10] sm:$0xff]
          %v1384 = vld [vmem:[%s2 + $0x18] sm:$0xff]
          %v1385 = vld [vmem:[%s2 + $0x20] sm:$0xff]
          %v1386 = vld [vmem:[%s2 + $0x28] sm:$0xff]
          %v1387 = vld [vmem:[%s2 + $0x30] sm:$0xff]
          %v1388 = vld [vmem:[%s2 + $0x38] sm:$0xff]
          %v1389 = vld [vmem:[%s2 + $0x40] sm:$0xff]
          %v1390 = vld [vmem:[%s2 + $0x48] sm:$0xff]
          %v1391 = vld [vmem:[%s2 + $0x50] sm:$0xff]
          %v1392 = vld [vmem:[%s2 + $0x58] sm:$0xff]
          %v1393 = vld [vmem:[%s2 + $0x60] sm:$0xff]
          %v1394 = vld [vmem:[%s2 + $0x68] sm:$0xff]
          %v1395 = vld [vmem:[%s2 + $0x70] sm:$0xff]
          %v1396 = vld [vmem:[%s2 + $0x78] sm:$0xff]
          %1397 = vmatpush.msra.mxu0 %v1396
          %1398 = vmatpush.msra.mxu0 %v1395
          %1399 = vmatpush.msra.mxu0 %v1394
          %1400 = vmatpush.msra.mxu0 %v1393
          %1401 = vmatpush.msra.mxu0 %v1392
          %1402 = vmatpush.msra.mxu0 %v1391
          %1403 = vmatpush.msra.mxu0 %v1390
          %1404 = vmatpush.msra.mxu0 %v1389
          %1405 = vmatpush.msra.mxu0 %v1388
          %1406 = vmatpush.msra.mxu0 %v1387
          %1407 = vmatpush.msra.mxu0 %v1386
          %1408 = vmatpush.msra.mxu0 %v1385
          %1409 = vmatpush.msra.mxu0 %v1384
          %1410 = vmatpush.msra.mxu0 %v1383
          %1411 = vmatpush.msra.mxu0 %v1382
          %1412 = vmatpush.msra.mxu0 %v1381
          %1413 = vmatmul.f32.gmra.mxu0 %v1349
          %v1414 = vpop.f32.mrf.mxu0
          %v1415 = vadd.f32 0.0, %v1414
          %1416 = vmatmul.f32.gmra.mxu0 %v1350
          %v1417 = vpop.f32.mrf.mxu0
          %v1418 = vadd.f32 0.0, %v1417
          %1419 = vmatmul.f32.gmra.mxu0 %v1351
          %v1420 = vpop.f32.mrf.mxu0
          %v1421 = vadd.f32 0.0, %v1420
          %1422 = vmatmul.f32.gmra.mxu0 %v1352
          %v1423 = vpop.f32.mrf.mxu0
          %v1424 = vadd.f32 0.0, %v1423
          %1425 = vmatmul.f32.gmra.mxu0 %v1353
          %v1426 = vpop.f32.mrf.mxu0
          %v1427 = vadd.f32 0.0, %v1426
          %1428 = vmatmul.f32.gmra.mxu0 %v1354
          %v1429 = vpop.f32.mrf.mxu0
          %v1430 = vadd.f32 0.0, %v1429
          %1431 = vmatmul.f32.gmra.mxu0 %v1355
          %v1432 = vpop.f32.mrf.mxu0
          %v1433 = vadd.f32 0.0, %v1432
          %1434 = vmatmul.f32.gmra.mxu0 %v1356
          %v1435 = vpop.f32.mrf.mxu0
          %v1436 = vadd.f32 0.0, %v1435
          %1437 = vmatmul.f32.gmra.mxu0 %v1357
          %v1438 = vpop.f32.mrf.mxu0
          %v1439 = vadd.f32 0.0, %v1438
          %1440 = vmatmul.f32.gmra.mxu0 %v1358
          %v1441 = vpop.f32.mrf.mxu0
          %v1442 = vadd.f32 0.0, %v1441
          %1443 = vmatmul.f32.gmra.mxu0 %v1359
          %v1444 = vpop.f32.mrf.mxu0
          %v1445 = vadd.f32 0.0, %v1444
          %1446 = vmatmul.f32.gmra.mxu0 %v1360
          %v1447 = vpop.f32.mrf.mxu0
          %v1448 = vadd.f32 0.0, %v1447
          %1449 = vmatmul.f32.gmra.mxu0 %v1361
          %v1450 = vpop.f32.mrf.mxu0
          %v1451 = vadd.f32 0.0, %v1450
          %1452 = vmatmul.f32.gmra.mxu0 %v1362
          %v1453 = vpop.f32.mrf.mxu0
          %v1454 = vadd.f32 0.0, %v1453
          %1455 = vmatmul.f32.gmra.mxu0 %v1363
          %v1456 = vpop.f32.mrf.mxu0
          %v1457 = vadd.f32 0.0, %v1456
          %1458 = vmatmul.f32.gmra.mxu0 %v1364
          %v1459 = vpop.f32.mrf.mxu0
          %v1460 = vadd.f32 0.0, %v1459
          %1461 = vmatmul.f32.gmra.mxu0 %v1365
          %v1462 = vpop.f32.mrf.mxu0
          %v1463 = vadd.f32 0.0, %v1462
          %1464 = vmatmul.f32.gmra.mxu0 %v1366
          %v1465 = vpop.f32.mrf.mxu0
          %v1466 = vadd.f32 0.0, %v1465
          %1467 = vmatmul.f32.gmra.mxu0 %v1367
          %v1468 = vpop.f32.mrf.mxu0
          %v1469 = vadd.f32 0.0, %v1468
          %1470 = vmatmul.f32.gmra.mxu0 %v1368
          %v1471 = vpop.f32.mrf.mxu0
          %v1472 = vadd.f32 0.0, %v1471
          %1473 = vmatmul.f32.gmra.mxu0 %v1369
          %v1474 = vpop.f32.mrf.mxu0
          %v1475 = vadd.f32 0.0, %v1474
          %1476 = vmatmul.f32.gmra.mxu0 %v1370
          %v1477 = vpop.f32.mrf.mxu0
          %v1478 = vadd.f32 0.0, %v1477
          %1479 = vmatmul.f32.gmra.mxu0 %v1371
          %v1480 = vpop.f32.mrf.mxu0
          %v1481 = vadd.f32 0.0, %v1480
          %1482 = vmatmul.f32.gmra.mxu0 %v1372
          %v1483 = vpop.f32.mrf.mxu0
          %v1484 = vadd.f32 0.0, %v1483
          %1485 = vmatmul.f32.gmra.mxu0 %v1373
          %v1486 = vpop.f32.mrf.mxu0
          %v1487 = vadd.f32 0.0, %v1486
          %1488 = vmatmul.f32.gmra.mxu0 %v1374
          %v1489 = vpop.f32.mrf.mxu0
          %v1490 = vadd.f32 0.0, %v1489
          %1491 = vmatmul.f32.gmra.mxu0 %v1375
          %v1492 = vpop.f32.mrf.mxu0
          %v1493 = vadd.f32 0.0, %v1492
          %1494 = vmatmul.f32.gmra.mxu0 %v1376
          %v1495 = vpop.f32.mrf.mxu0
          %v1496 = vadd.f32 0.0, %v1495
          %1497 = vmatmul.f32.gmra.mxu0 %v1377
          %v1498 = vpop.f32.mrf.mxu0
          %v1499 = vadd.f32 0.0, %v1498
          %1500 = vmatmul.f32.gmra.mxu0 %v1378
          %v1501 = vpop.f32.mrf.mxu0
          %v1502 = vadd.f32 0.0, %v1501
          %1503 = vmatmul.f32.gmra.mxu0 %v1379
          %v1504 = vpop.f32.mrf.mxu0
          %v1505 = vadd.f32 0.0, %v1504
          %1506 = vmatmul.f32.gmra.mxu0 %v1380
          %v1507 = vpop.f32.mrf.mxu0
          %v1508 = vadd.f32 0.0, %v1507
          %1509 = vdwg.mxu0
          %v1510 = vpack.c.bf16 %v1415, %v1415
          %v1511 = vpack.c.bf16 %v1418, %v1418
          %v1512 = vpack.c.bf16 %v1421, %v1421
          %v1513 = vpack.c.bf16 %v1424, %v1424
          %v1514 = vpack.c.bf16 %v1427, %v1427
          %v1515 = vpack.c.bf16 %v1430, %v1430
          %v1516 = vpack.c.bf16 %v1433, %v1433
          %v1517 = vpack.c.bf16 %v1436, %v1436
          %v1518 = vpack.c.bf16 %v1439, %v1439
          %v1519 = vpack.c.bf16 %v1442, %v1442
          %v1520 = vpack.c.bf16 %v1445, %v1445
          %v1521 = vpack.c.bf16 %v1448, %v1448
          %v1522 = vpack.c.bf16 %v1451, %v1451
          %v1523 = vpack.c.bf16 %v1454, %v1454
          %v1524 = vpack.c.bf16 %v1457, %v1457
          %v1525 = vpack.c.bf16 %v1460, %v1460
          %v1526 = vpack.c.bf16 %v1463, %v1463
          %v1527 = vpack.c.bf16 %v1466, %v1466
          %v1528 = vpack.c.bf16 %v1469, %v1469
          %v1529 = vpack.c.bf16 %v1472, %v1472
          %v1530 = vpack.c.bf16 %v1475, %v1475
          %v1531 = vpack.c.bf16 %v1478, %v1478
          %v1532 = vpack.c.bf16 %v1481, %v1481
          %v1533 = vpack.c.bf16 %v1484, %v1484
          %v1534 = vpack.c.bf16 %v1487, %v1487
          %v1535 = vpack.c.bf16 %v1490, %v1490
          %v1536 = vpack.c.bf16 %v1493, %v1493
          %v1537 = vpack.c.bf16 %v1496, %v1496
          %v1538 = vpack.c.bf16 %v1499, %v1499
          %v1539 = vpack.c.bf16 %v1502, %v1502
          %v1540 = vpack.c.bf16 %v1505, %v1505
          %v1541 = vpack.c.bf16 %v1508, %v1508
          %1542 = vst [vmem:[%s211] sm:$0xf] %v1510
          %1543 = vst [vmem:[%s211 + $0x4] sm:$0xf] %v1511
          %1544 = vst [vmem:[%s211 + $0x8] sm:$0xf] %v1512
          %1545 = vst [vmem:[%s211 + $0xc] sm:$0xf] %v1513
          %1546 = vst [vmem:[%s211 + $0x10] sm:$0xf] %v1514
          %1547 = vst [vmem:[%s211 + $0x14] sm:$0xf] %v1515
          %1548 = vst [vmem:[%s211 + $0x18] sm:$0xf] %v1516
          %1549 = vst [vmem:[%s211 + $0x1c] sm:$0xf] %v1517
          %1550 = vst [vmem:[%s211 + $0x20] sm:$0xf] %v1518
          %1551 = vst [vmem:[%s211 + $0x24] sm:$0xf] %v1519
          %1552 = vst [vmem:[%s211 + $0x28] sm:$0xf] %v1520
          %1553 = vst [vmem:[%s211 + $0x2c] sm:$0xf] %v1521
          %1554 = vst [vmem:[%s211 + $0x30] sm:$0xf] %v1522
          %1555 = vst [vmem:[%s211 + $0x34] sm:$0xf] %v1523
          %1556 = vst [vmem:[%s211 + $0x38] sm:$0xf] %v1524
          %1557 = vst [vmem:[%s211 + $0x3c] sm:$0xf] %v1525
          %1558 = vst [vmem:[%s211 + $0x40] sm:$0xf] %v1526
          %1559 = vst [vmem:[%s211 + $0x44] sm:$0xf] %v1527
          %1560 = vst [vmem:[%s211 + $0x48] sm:$0xf] %v1528
          %1561 = vst [vmem:[%s211 + $0x4c] sm:$0xf] %v1529
          %1562 = vst [vmem:[%s211 + $0x50] sm:$0xf] %v1530
          %1563 = vst [vmem:[%s211 + $0x54] sm:$0xf] %v1531
          %1564 = vst [vmem:[%s211 + $0x58] sm:$0xf] %v1532
          %1565 = vst [vmem:[%s211 + $0x5c] sm:$0xf] %v1533
          %1566 = vst [vmem:[%s211 + $0x60] sm:$0xf] %v1534
          %1567 = vst [vmem:[%s211 + $0x64] sm:$0xf] %v1535
          %1568 = vst [vmem:[%s211 + $0x68] sm:$0xf] %v1536
          %1569 = vst [vmem:[%s211 + $0x6c] sm:$0xf] %v1537
          %1570 = vst [vmem:[%s211 + $0x70] sm:$0xf] %v1538
          %1571 = vst [vmem:[%s211 + $0x74] sm:$0xf] %v1539
          %1572 = vst [vmem:[%s211 + $0x78] sm:$0xf] %v1540
          %1573 = vst [vmem:[%s211 + $0x7c] sm:$0xf] %v1541
        $region44: #{gcn_net_forward.2} parent=31 // pred_fallthru
          _
        %s1574 = smul.u32 32, %s21
        %p1575 = scmp.lt.s32.totalorder %s1574, 63
        %s1576 = scalar_select %p1575, %s1574, 63
        %s1577 = smul.addr %s1576, 4
        %s1578 = scalar_lea.vmem %s3, %s1577
        // Predicated region
        $region45: #{gcn_net_forward.2} parent=31 // pred_check
          %p1579 = pneg %p117
        $region46: #{gcn_net_forward.2} parent=31 // pred_check_branch
          %1581 = sbr.rel (%p1579) target = $region48
        $region47: #{gcn_net_forward.2} parent=31 // pred_region
          %s1582 = smul.u32 32, %s21
        $region48: #{gcn_net_forward.2} parent=31 // pred_fallthru
          _
      $region32: #{gcn_net_forward.2} parent=5 // pred_fallthru
        _
      %p1583 = scmp.le.s32.totalorder 2, %s12
      // Predicated region
      $region49: #{gcn_net_forward.2} parent=5 // pred_check
        %p1584 = pneg %p1583
      $region50: #{gcn_net_forward.2} parent=5 // pred_check_branch
        %1586 = sbr.rel (%p1584) target = $region52
      $region51: #{gcn_net_forward.2} parent=5 // pred_region
        %s1587 = ssub.s32 %s12, 2
        // Predicated region
        $region53: #{gcn_net_forward.2} parent=51 // pred_check
          %p1588 = pneg %p123
        $region54: #{gcn_net_forward.2} parent=51 // pred_check_branch
          %1590 = sbr.rel (%p1588) target = $region56
        $region55: #{gcn_net_forward.2} parent=51 // pred_region
          %s1591 = smul.u32 32, %s23
          %p1592 = scmp.lt.s32.totalorder %s1591, 63
          %s1593 = scalar_select %p1592, %s1591, 63
          %s1594 = smul.addr %s1593, 4
          %s1595 = scalar_lea.vmem %s3, %s1594
        $region56: #{gcn_net_forward.2} parent=51 // pred_fallthru
          _
      $region52: #{gcn_net_forward.2} parent=5 // pred_fallthru
        _
    $region6: #{gcn_net_forward.2} parent=1 // loop_footer
      %s16 = sadd.s32 1, %s12
    $region7: #{gcn_net_forward.2} parent=1 // loop_footer_branch
      %11 = sbr.rel target = $region3
    $region8: #{gcn_net_forward.2} parent=1 // loop_exit
      _
    %1596 = vsyncpa [#allocation4], 1
    %s1597 = scalar_lea.sflag [#allocation4], 1
    %1598 = vsyncpa %s1597, 1

// kernel: gcn_net_forward.3
$region0: #{gcn_net_forward.3}
  #allocation0 [shape = 'u32[]', space=smem, size = 0x4, offset = 0x4, fixed_abs, tag = 'smem constant byte address 0x4 - core index']
  #allocation1 [shape = 'u32[72,128]{1,0:T(1,128)}', space=vmem, size = 0x9000, scoped, tag = 'internal scratch']
  #allocation2 [shape = 'f32[256,128]{1,0:T(8,128)}', space=vmem, size = 0x20000, scoped, tag = 'scratch operand']
  %s0 = inlined_call_operand.hbm [shape: bf16[512,512], index: 0, kind: input, shape index: {}]
  %s1 = inlined_call_operand.vmem [shape: bf16[512,128], index: 1, kind: input, shape index: {}]
  %s2 = inlined_call_operand.vmem [shape: f32[512,128], index: 2, kind: output, shape index: {}]
  %s3 = sld [smem:[#allocation0]]
  $region53: #{gcn_net_forward.3} parent=0
    _
  %s5 = ssub.s32 1, %s3
  %s6 = scalar_select 0, %s5, %s3
  $region1: #{gcn_net_forward.3} parent=0
    #allocation3 [shape = 'u8[524288]{0}', space=vmem, size = 0x80000, scoped, tag = 'input window, operand 0']
    #allocation4 [shape = 's32[2]{0}', space=sflag, size = 0x8, scoped, tag = 'scoped memory for gcn_net_forward.3']
    %7 = vsyncpa [#allocation4], 0
    %s8 = scalar_lea.sflag [#allocation4], 1
    %9 = vsyncpa %s8, 0
    loop: start=0, step=1, limit=4
    $region2: #{gcn_net_forward.3} parent=1 // loop_pre_header
      _
    $region3: #{gcn_net_forward.3} parent=1 // loop_header
      %s11 = sphi 0, %s15
      %p12 = scmp.ge.s32.totalorder %s11, 4
      %s18 = sphi 0, %s30
      %s19 = sphi 0, %s26
      %s20 = sphi 0, %s18
      %s21 = sphi 0, %s19
      %s22 = sphi 0, %s20
      %s23 = sphi 0, %s21
      %s35 = sphi 0, %s37
      %s38 = sphi 0, %s35
      %s39 = sphi 0, %s38
      %s55 = sphi 0, %s39
      %s59 = sphi 0, %s59
      %s61 = sphi 0, %s59
      %s62 = sphi 0, %s61
      %s76 = sphi 0, %s62
      %s82 = sphi 0, %s84
      %s85 = sphi 0, %s82
      %s86 = sphi 0, %s85
      %s102 = sphi 0, %s86
    $region4: #{gcn_net_forward.3} parent=1 // loop_header_branch
      %14 = sbr.rel (%p12) target = $region8
    $region5: #{gcn_net_forward.3} parent=1 // loop_body
      %s16 = ssub.s32 %s11, 1
      %s17 = ssub.s32 %s11, 2
      %s24 = sadd.s32 1, %s19
      %p25 = scmp.ge.s32.totalorder %s24, 1
      %s26 = scalar_select %p25, 0, %s24
      %s27 = sadd.s32 1, %s18
      %s28 = scalar_select %p25, %s27, %s18
      %p29 = scmp.ge.s32.totalorder %s28, 2
      %s30 = scalar_select %p29, 0, %s28
      %s31 = ssub.s32 %s18, %s30
      %s32 = ssub.s32 %s19, %s26
      %s33 = sor.u32 %s31, %s32
      %p34 = scmp.eq.s32.totalorder %s33, 0
      %s36 = sadd.s32 %s35, 1
      %s37 = scalar_select %p34, %s35, %s36
      %p40 = pneg %p34
      %p41 = scmp.eq.s32.totalorder %s11, 1
      %p42 = por %p40, %p41
      %p43 = scmp.ne.s32.totalorder %s35, %s38
      %p44 = scmp.eq.s32.totalorder %s11, 0
      %p45 = por %p43, %p44
      %p46 = scmp.ne.s32.totalorder %s35, %s38
      %p47 = scmp.eq.s32.totalorder %s16, 1
      %p48 = por %p46, %p47
      %p49 = scmp.ne.s32.totalorder %s38, %s39
      %p50 = scmp.eq.s32.totalorder %s16, 0
      %p51 = por %p49, %p50
      %p52 = scmp.ne.s32.totalorder %s38, %s39
      %p53 = scmp.eq.s32.totalorder %s17, 1
      %p54 = por %p52, %p53
      %p56 = scmp.ne.s32.totalorder %s39, %s55
      %p57 = scmp.eq.s32.totalorder %s17, 0
      %p58 = por %p56, %p57
      %s60 = sadd.s32 %s59, 1
      %p63 = scmp.eq.s32.totalorder %s11, 1
      %p64 = scmp.ne.s32.totalorder %s59, %s61
      %p65 = scmp.eq.s32.totalorder %s11, 0
      %p66 = por %p64, %p65
      %p67 = scmp.ne.s32.totalorder %s59, %s61
      %p68 = scmp.eq.s32.totalorder %s16, 1
      %p69 = por %p67, %p68
      %p70 = scmp.ne.s32.totalorder %s61, %s62
      %p71 = scmp.eq.s32.totalorder %s16, 0
      %p72 = por %p70, %p71
      %p73 = scmp.ne.s32.totalorder %s61, %s62
      %p74 = scmp.eq.s32.totalorder %s17, 1
      %p75 = por %p73, %p74
      %p77 = scmp.ne.s32.totalorder %s62, %s76
      %p78 = scmp.eq.s32.totalorder %s17, 0
      %p79 = por %p77, %p78
      %s80 = ssub.s32 %s18, %s30
      %p81 = scmp.eq.s32.totalorder %s80, 0
      %s83 = sadd.s32 %s82, 1
      %s84 = scalar_select %p81, %s82, %s83
      %p87 = pneg %p81
      %p88 = scmp.eq.s32.totalorder %s11, 1
      %p89 = por %p87, %p88
      %p90 = scmp.ne.s32.totalorder %s82, %s85
      %p91 = scmp.eq.s32.totalorder %s11, 0
      %p92 = por %p90, %p91
      %p93 = scmp.ne.s32.totalorder %s82, %s85
      %p94 = scmp.eq.s32.totalorder %s16, 1
      %p95 = por %p93, %p94
      %p96 = scmp.ne.s32.totalorder %s85, %s86
      %p97 = scmp.eq.s32.totalorder %s16, 0
      %p98 = por %p96, %p97
      %p99 = scmp.ne.s32.totalorder %s85, %s86
      %p100 = scmp.eq.s32.totalorder %s17, 1
      %p101 = por %p99, %p100
      %p103 = scmp.ne.s32.totalorder %s86, %s102
      %p104 = scmp.eq.s32.totalorder %s17, 0
      %p105 = por %p103, %p104
      %p106 = scmp.le.s32.totalorder 1, %s11
      %p107 = scmp.lt.s32.totalorder %s11, 3
      %p108 = pnand %p106, %p107
      %p109 = pneg %p108
      // Predicated region
      $region9: #{gcn_net_forward.3} parent=5 // pred_check
        _
      $region10: #{gcn_net_forward.3} parent=5 // pred_check_branch
        %111 = sbr.rel (%p108) target = $region12
      $region11: #{gcn_net_forward.3} parent=5 // pred_region
        %s112 = ssub.s32 %s11, 1
        // Predicated region
        $region13: #{gcn_net_forward.3} parent=11 // pred_check
          %p113 = pneg %p72
        $region14: #{gcn_net_forward.3} parent=11 // pred_check_branch
          %115 = sbr.rel (%p113) target = $region16
        $region15: #{gcn_net_forward.3} parent=11 // pred_region
          _
        $region16: #{gcn_net_forward.3} parent=11 // pred_fallthru
          _
      $region12: #{gcn_net_forward.3} parent=5 // pred_fallthru
        _
      %p116 = scmp.lt.s32.totalorder %s11, 2
      // Predicated region
      $region17: #{gcn_net_forward.3} parent=5 // pred_check
        %p117 = pneg %p116
      $region18: #{gcn_net_forward.3} parent=5 // pred_check_branch
        %119 = sbr.rel (%p117) target = $region20
      $region19: #{gcn_net_forward.3} parent=5 // pred_region
        // Predicated region
        $region21: #{gcn_net_forward.3} parent=19 // pred_check
          %p120 = pneg %p45
        $region22: #{gcn_net_forward.3} parent=19 // pred_check_branch
          %122 = sbr.rel (%p120) target = $region24
        $region23: #{gcn_net_forward.3} parent=19 // pred_region
          %s123 = sand.u32 %s35, 1
          %s124 = scalar_lea.sflag [#allocation4], %s123
          %s125 = sand.u32 %s35, 1
          %s126 = smul.addr %s125, 512
          %s127 = scalar_lea.vmem [#allocation3], %s126
          %s128 = smul.u32 32, %s18
          %s129 = smul.u32 4, %s19
          %131 = vsyncadd %s124, 0
          %s132 = smul.addr %s128, 4
          %s133 = sadd.s32 %s129, %s132
          %s134 = smul.addr %s133, 4
          %s135 = scalar_lea.hbm %s0, %s134
          %s136 = sshll.u32 %s135, 4
          %s137 = int_to_ptr.hbm [resolvable:$true] %s136
          %s138 = sshll.u32 %s127, 4
          %s139 = int_to_ptr.vmem [resolvable:$true] %s138
          %144 = dma.hbm_to_vmem [thread:$0]  %s137, 8192, %s139, %s124, 256, 256, 16
        $region24: #{gcn_net_forward.3} parent=19 // pred_fallthru
          _
      $region20: #{gcn_net_forward.3} parent=5 // pred_fallthru
        _
      %p145 = scmp.le.s32.totalorder 1, %s11
      %p146 = scmp.lt.s32.totalorder %s11, 3
      %p147 = pnand %p145, %p146
      %p148 = pneg %p147
      // Predicated region
      $region25: #{gcn_net_forward.3} parent=5 // pred_check
        _
      $region26: #{gcn_net_forward.3} parent=5 // pred_check_branch
        %150 = sbr.rel (%p147) target = $region28
      $region27: #{gcn_net_forward.3} parent=5 // pred_region
        %s151 = ssub.s32 %s11, 1
        %s152 = sand.u32 %s38, 1
        %s153 = scalar_lea.sflag [#allocation4], %s152
        %s154 = sand.u32 %s38, 1
        %s155 = smul.addr %s154, 512
        %s156 = scalar_lea.vmem [#allocation3], %s155
        // Predicated region
        $region29: #{gcn_net_forward.3} parent=27 // pred_check
          %p157 = pneg %p51
        $region30: #{gcn_net_forward.3} parent=27 // pred_check_branch
          %159 = sbr.rel (%p157) target = $region32
        $region31: #{gcn_net_forward.3} parent=27 // pred_region
          %161 = dma.done %s153, 8192
        $region32: #{gcn_net_forward.3} parent=27 // pred_fallthru
          _
        %s162 = sand.u32 %s38, 1
        %s163 = scalar_lea.sflag [#allocation4], %s162
        %s164 = sand.u32 %s38, 1
        %s165 = smul.addr %s164, 512
        %s166 = scalar_lea.vmem [#allocation3], %s165
        %p167 = pneg %p51
        %p168 = pneg %p48
        %p169 = pneg %p72
        %p170 = pneg %p69
        %p171 = pneg %p98
        %p172 = pneg %p95
        %s173 = smul.u32 32, %s20
        %p174 = scmp.lt.s32.totalorder %s173, 63
        %s175 = scalar_select %p174, %s173, 63
        %s176 = smul.addr %s175, 8
        %s177 = scalar_lea.vmem %s2, %s176
        %s178 = smul.u32 32, %s20
        %s179 = smul.u32 4, %s21
        %s180 = smul.u32 32, %s20
        %p181 = scmp.lt.s32.totalorder %s180, 63
        %s182 = scalar_select %p181, %s180, 63
        %s183 = smul.addr %s182, 8
        %s184 = scalar_lea.vmem %s2, %s183
        %s185 = smul.u32 32, %s20
        %p186 = scmp.eq.s32.totalorder %s21, 0
        // Predicated region
        $region33: #{gcn_net_forward.3} parent=27 // pred_check
          %p187 = pneg %p186
        $region34: #{gcn_net_forward.3} parent=27 // pred_check_branch
          %189 = sbr.rel (%p187) target = $region36
        $region35: #{gcn_net_forward.3} parent=27 // pred_region
          %190 = vst [vmem:[#allocation2] sm:$0xff] 0.0
          %191 = vst [vmem:[#allocation2 + $0x8] sm:$0xff] 0.0
          %192 = vst [vmem:[#allocation2 + $0x10] sm:$0xff] 0.0
          %193 = vst [vmem:[#allocation2 + $0x18] sm:$0xff] 0.0
          %194 = vst [vmem:[#allocation2 + $0x20] sm:$0xff] 0.0
          %195 = vst [vmem:[#allocation2 + $0x28] sm:$0xff] 0.0
          %196 = vst [vmem:[#allocation2 + $0x30] sm:$0xff] 0.0
          %197 = vst [vmem:[#allocation2 + $0x38] sm:$0xff] 0.0
          %198 = vst [vmem:[#allocation2 + $0x40] sm:$0xff] 0.0
          %199 = vst [vmem:[#allocation2 + $0x48] sm:$0xff] 0.0
          %200 = vst [vmem:[#allocation2 + $0x50] sm:$0xff] 0.0
          %201 = vst [vmem:[#allocation2 + $0x58] sm:$0xff] 0.0
          %202 = vst [vmem:[#allocation2 + $0x60] sm:$0xff] 0.0
          %203 = vst [vmem:[#allocation2 + $0x68] sm:$0xff] 0.0
          %204 = vst [vmem:[#allocation2 + $0x70] sm:$0xff] 0.0
          %205 = vst [vmem:[#allocation2 + $0x78] sm:$0xff] 0.0
          %206 = vst [vmem:[#allocation2 + $0x80] sm:$0xff] 0.0
          %207 = vst [vmem:[#allocation2 + $0x88] sm:$0xff] 0.0
          %208 = vst [vmem:[#allocation2 + $0x90] sm:$0xff] 0.0
          %209 = vst [vmem:[#allocation2 + $0x98] sm:$0xff] 0.0
          %210 = vst [vmem:[#allocation2 + $0xa0] sm:$0xff] 0.0
          %211 = vst [vmem:[#allocation2 + $0xa8] sm:$0xff] 0.0
          %212 = vst [vmem:[#allocation2 + $0xb0] sm:$0xff] 0.0
          %213 = vst [vmem:[#allocation2 + $0xb8] sm:$0xff] 0.0
          %214 = vst [vmem:[#allocation2 + $0xc0] sm:$0xff] 0.0
          %215 = vst [vmem:[#allocation2 + $0xc8] sm:$0xff] 0.0
          %216 = vst [vmem:[#allocation2 + $0xd0] sm:$0xff] 0.0
          %217 = vst [vmem:[#allocation2 + $0xd8] sm:$0xff] 0.0
          %218 = vst [vmem:[#allocation2 + $0xe0] sm:$0xff] 0.0
          %219 = vst [vmem:[#allocation2 + $0xe8] sm:$0xff] 0.0
          %220 = vst [vmem:[#allocation2 + $0xf0] sm:$0xff] 0.0
          %221 = vst [vmem:[#allocation2 + $0xf8] sm:$0xff] 0.0
        $region36: #{gcn_net_forward.3} parent=27 // pred_fallthru
          _
        %s222 = smul.u32 %s21, 512
        %s223 = sshra.s32 %s222, 3
        %s224 = sand.u32 %s222, 7
        %s225 = smul.addr %s223, 4
        %s226 = scalar_lea.vmem %s1, %s225
        %v227 = vld [vmem:[%s226] sm:$0xf]
        %v228 = vld [vmem:[%s226 + $0x4] sm:$0xf]
        %v229 = vld [vmem:[%s226 + $0x8] sm:$0xf]
        %v230 = vld [vmem:[%s226 + $0xc] sm:$0xf]
        %v231 = vld [vmem:[%s226 + $0x10] sm:$0xf]
        %v232 = vld [vmem:[%s226 + $0x14] sm:$0xf]
        %v233 = vld [vmem:[%s226 + $0x18] sm:$0xf]
        %v234 = vld [vmem:[%s226 + $0x1c] sm:$0xf]
        %v235 = vld [vmem:[%s226 + $0x20] sm:$0xf]
        %v236 = vld [vmem:[%s226 + $0x24] sm:$0xf]
        %v237 = vld [vmem:[%s226 + $0x28] sm:$0xf]
        %v238 = vld [vmem:[%s226 + $0x2c] sm:$0xf]
        %v239 = vld [vmem:[%s226 + $0x30] sm:$0xf]
        %v240 = vld [vmem:[%s226 + $0x34] sm:$0xf]
        %v241 = vld [vmem:[%s226 + $0x38] sm:$0xf]
        %v242 = vld [vmem:[%s226 + $0x3c] sm:$0xf]
        %v243 = vld [vmem:[%s226 + $0x40] sm:$0xf]
        %v244 = vld [vmem:[%s226 + $0x44] sm:$0xf]
        %v245 = vld [vmem:[%s226 + $0x48] sm:$0xf]
        %v246 = vld [vmem:[%s226 + $0x4c] sm:$0xf]
        %v247 = vld [vmem:[%s226 + $0x50] sm:$0xf]
        %v248 = vld [vmem:[%s226 + $0x54] sm:$0xf]
        %v249 = vld [vmem:[%s226 + $0x58] sm:$0xf]
        %v250 = vld [vmem:[%s226 + $0x5c] sm:$0xf]
        %v251 = vld [vmem:[%s226 + $0x60] sm:$0xf]
        %v252 = vld [vmem:[%s226 + $0x64] sm:$0xf]
        %v253 = vld [vmem:[%s226 + $0x68] sm:$0xf]
        %v254 = vld [vmem:[%s226 + $0x6c] sm:$0xf]
        %v255 = vld [vmem:[%s226 + $0x70] sm:$0xf]
        %v256 = vld [vmem:[%s226 + $0x74] sm:$0xf]
        %v257 = vld [vmem:[%s226 + $0x78] sm:$0xf]
        %v258 = vld [vmem:[%s226 + $0x7c] sm:$0xf]
        %v259 = vld [vmem:[%s226 + $0x80] sm:$0xf]
        %v260 = vld [vmem:[%s226 + $0x84] sm:$0xf]
        %v261 = vld [vmem:[%s226 + $0x88] sm:$0xf]
        %v262 = vld [vmem:[%s226 + $0x8c] sm:$0xf]
        %v263 = vld [vmem:[%s226 + $0x90] sm:$0xf]
        %v264 = vld [vmem:[%s226 + $0x94] sm:$0xf]
        %v265 = vld [vmem:[%s226 + $0x98] sm:$0xf]
        %v266 = vld [vmem:[%s226 + $0x9c] sm:$0xf]
        %v267 = vld [vmem:[%s226 + $0xa0] sm:$0xf]
        %v268 = vld [vmem:[%s226 + $0xa4] sm:$0xf]
        %v269 = vld [vmem:[%s226 + $0xa8] sm:$0xf]
        %v270 = vld [vmem:[%s226 + $0xac] sm:$0xf]
        %v271 = vld [vmem:[%s226 + $0xb0] sm:$0xf]
        %v272 = vld [vmem:[%s226 + $0xb4] sm:$0xf]
        %v273 = vld [vmem:[%s226 + $0xb8] sm:$0xf]
        %v274 = vld [vmem:[%s226 + $0xbc] sm:$0xf]
        %v275 = vld [vmem:[%s226 + $0xc0] sm:$0xf]
        %v276 = vld [vmem:[%s226 + $0xc4] sm:$0xf]
        %v277 = vld [vmem:[%s226 + $0xc8] sm:$0xf]
        %v278 = vld [vmem:[%s226 + $0xcc] sm:$0xf]
        %v279 = vld [vmem:[%s226 + $0xd0] sm:$0xf]
        %v280 = vld [vmem:[%s226 + $0xd4] sm:$0xf]
        %v281 = vld [vmem:[%s226 + $0xd8] sm:$0xf]
        %v282 = vld [vmem:[%s226 + $0xdc] sm:$0xf]
        %v283 = vld [vmem:[%s226 + $0xe0] sm:$0xf]
        %v284 = vld [vmem:[%s226 + $0xe4] sm:$0xf]
        %v285 = vld [vmem:[%s226 + $0xe8] sm:$0xf]
        %v286 = vld [vmem:[%s226 + $0xec] sm:$0xf]
        %v287 = vld [vmem:[%s226 + $0xf0] sm:$0xf]
        %v288 = vld [vmem:[%s226 + $0xf4] sm:$0xf]
        %v289 = vld [vmem:[%s226 + $0xf8] sm:$0xf]
        %v290 = vld [vmem:[%s226 + $0xfc] sm:$0xf]
        %v291 = vld [vmem:[#allocation2] sm:$0xff]
        %v292 = vld [vmem:[#allocation2 + $0x8] sm:$0xff]
        %v293 = vld [vmem:[#allocation2 + $0x10] sm:$0xff]
        %v294 = vld [vmem:[#allocation2 + $0x18] sm:$0xff]
        %v295 = vld [vmem:[#allocation2 + $0x20] sm:$0xff]
        %v296 = vld [vmem:[#allocation2 + $0x28] sm:$0xff]
        %v297 = vld [vmem:[#allocation2 + $0x30] sm:$0xff]
        %v298 = vld [vmem:[#allocation2 + $0x38] sm:$0xff]
        %v299 = vld [vmem:[#allocation2 + $0x40] sm:$0xff]
        %v300 = vld [vmem:[#allocation2 + $0x48] sm:$0xff]
        %v301 = vld [vmem:[#allocation2 + $0x50] sm:$0xff]
        %v302 = vld [vmem:[#allocation2 + $0x58] sm:$0xff]
        %v303 = vld [vmem:[#allocation2 + $0x60] sm:$0xff]
        %v304 = vld [vmem:[#allocation2 + $0x68] sm:$0xff]
        %v305 = vld [vmem:[#allocation2 + $0x70] sm:$0xff]
        %v306 = vld [vmem:[#allocation2 + $0x78] sm:$0xff]
        %v307 = vld [vmem:[#allocation2 + $0x80] sm:$0xff]
        %v308 = vld [vmem:[#allocation2 + $0x88] sm:$0xff]
        %v309 = vld [vmem:[#allocation2 + $0x90] sm:$0xff]
        %v310 = vld [vmem:[#allocation2 + $0x98] sm:$0xff]
        %v311 = vld [vmem:[#allocation2 + $0xa0] sm:$0xff]
        %v312 = vld [vmem:[#allocation2 + $0xa8] sm:$0xff]
        %v313 = vld [vmem:[#allocation2 + $0xb0] sm:$0xff]
        %v314 = vld [vmem:[#allocation2 + $0xb8] sm:$0xff]
        %v315 = vld [vmem:[#allocation2 + $0xc0] sm:$0xff]
        %v316 = vld [vmem:[#allocation2 + $0xc8] sm:$0xff]
        %v317 = vld [vmem:[#allocation2 + $0xd0] sm:$0xff]
        %v318 = vld [vmem:[#allocation2 + $0xd8] sm:$0xff]
        %v319 = vld [vmem:[#allocation2 + $0xe0] sm:$0xff]
        %v320 = vld [vmem:[#allocation2 + $0xe8] sm:$0xff]
        %v321 = vld [vmem:[#allocation2 + $0xf0] sm:$0xff]
        %v322 = vld [vmem:[#allocation2 + $0xf8] sm:$0xff]
        %v323 = vld [vmem:[%s156] sm:$0xff]
        %v324 = vld [vmem:[%s156 + $0x8] sm:$0xff]
        %v325 = vld [vmem:[%s156 + $0x10] sm:$0xff]
        %v326 = vld [vmem:[%s156 + $0x18] sm:$0xff]
        %v327 = vld [vmem:[%s156 + $0x20] sm:$0xff]
        %v328 = vld [vmem:[%s156 + $0x28] sm:$0xff]
        %v329 = vld [vmem:[%s156 + $0x30] sm:$0xff]
        %v330 = vld [vmem:[%s156 + $0x38] sm:$0xff]
        %v331 = vld [vmem:[%s156 + $0x40] sm:$0xff]
        %v332 = vld [vmem:[%s156 + $0x48] sm:$0xff]
        %v333 = vld [vmem:[%s156 + $0x50] sm:$0xff]
        %v334 = vld [vmem:[%s156 + $0x58] sm:$0xff]
        %v335 = vld [vmem:[%s156 + $0x60] sm:$0xff]
        %v336 = vld [vmem:[%s156 + $0x68] sm:$0xff]
        %v337 = vld [vmem:[%s156 + $0x70] sm:$0xff]
        %v338 = vld [vmem:[%s156 + $0x78] sm:$0xff]
        %v339 = vld [vmem:[%s156 + $0x80] sm:$0xff]
        %v340 = vld [vmem:[%s156 + $0x88] sm:$0xff]
        %v341 = vld [vmem:[%s156 + $0x90] sm:$0xff]
        %v342 = vld [vmem:[%s156 + $0x98] sm:$0xff]
        %v343 = vld [vmem:[%s156 + $0xa0] sm:$0xff]
        %v344 = vld [vmem:[%s156 + $0xa8] sm:$0xff]
        %v345 = vld [vmem:[%s156 + $0xb0] sm:$0xff]
        %v346 = vld [vmem:[%s156 + $0xb8] sm:$0xff]
        %v347 = vld [vmem:[%s156 + $0xc0] sm:$0xff]
        %v348 = vld [vmem:[%s156 + $0xc8] sm:$0xff]
        %v349 = vld [vmem:[%s156 + $0xd0] sm:$0xff]
        %v350 = vld [vmem:[%s156 + $0xd8] sm:$0xff]
        %v351 = vld [vmem:[%s156 + $0xe0] sm:$0xff]
        %v352 = vld [vmem:[%s156 + $0xe8] sm:$0xff]
        %v353 = vld [vmem:[%s156 + $0xf0] sm:$0xff]
        %v354 = vld [vmem:[%s156 + $0xf8] sm:$0xff]
        %v355 = vld [vmem:[%s156 + $0x100] sm:$0xff]
        %v356 = vld [vmem:[%s156 + $0x108] sm:$0xff]
        %v357 = vld [vmem:[%s156 + $0x110] sm:$0xff]
        %v358 = vld [vmem:[%s156 + $0x118] sm:$0xff]
        %v359 = vld [vmem:[%s156 + $0x120] sm:$0xff]
        %v360 = vld [vmem:[%s156 + $0x128] sm:$0xff]
        %v361 = vld [vmem:[%s156 + $0x130] sm:$0xff]
        %v362 = vld [vmem:[%s156 + $0x138] sm:$0xff]
        %v363 = vld [vmem:[%s156 + $0x140] sm:$0xff]
        %v364 = vld [vmem:[%s156 + $0x148] sm:$0xff]
        %v365 = vld [vmem:[%s156 + $0x150] sm:$0xff]
        %v366 = vld [vmem:[%s156 + $0x158] sm:$0xff]
        %v367 = vld [vmem:[%s156 + $0x160] sm:$0xff]
        %v368 = vld [vmem:[%s156 + $0x168] sm:$0xff]
        %v369 = vld [vmem:[%s156 + $0x170] sm:$0xff]
        %v370 = vld [vmem:[%s156 + $0x178] sm:$0xff]
        %v371 = vld [vmem:[%s156 + $0x180] sm:$0xff]
        %v372 = vld [vmem:[%s156 + $0x188] sm:$0xff]
        %v373 = vld [vmem:[%s156 + $0x190] sm:$0xff]
        %v374 = vld [vmem:[%s156 + $0x198] sm:$0xff]
        %v375 = vld [vmem:[%s156 + $0x1a0] sm:$0xff]
        %v376 = vld [vmem:[%s156 + $0x1a8] sm:$0xff]
        %v377 = vld [vmem:[%s156 + $0x1b0] sm:$0xff]
        %v378 = vld [vmem:[%s156 + $0x1b8] sm:$0xff]
        %v379 = vld [vmem:[%s156 + $0x1c0] sm:$0xff]
        %v380 = vld [vmem:[%s156 + $0x1c8] sm:$0xff]
        %v381 = vld [vmem:[%s156 + $0x1d0] sm:$0xff]
        %v382 = vld [vmem:[%s156 + $0x1d8] sm:$0xff]
        %v383 = vld [vmem:[%s156 + $0x1e0] sm:$0xff]
        %v384 = vld [vmem:[%s156 + $0x1e8] sm:$0xff]
        %v385 = vld [vmem:[%s156 + $0x1f0] sm:$0xff]
        %v386 = vld [vmem:[%s156 + $0x1f8] sm:$0xff]
        %v451 = vunpack.c.l.b16 %v323
        %v452 = vunpack.c.h.b16 %v323
        %v453 = vunpack.c.l.b16 %v324
        %v454 = vunpack.c.h.b16 %v324
        %v455 = vunpack.c.l.b16 %v325
        %v456 = vunpack.c.h.b16 %v325
        %v457 = vunpack.c.l.b16 %v326
        %v458 = vunpack.c.h.b16 %v326
        %v459 = vunpack.c.l.b16 %v327
        %v460 = vunpack.c.h.b16 %v327
        %v461 = vunpack.c.l.b16 %v328
        %v462 = vunpack.c.h.b16 %v328
        %v463 = vunpack.c.l.b16 %v329
        %v464 = vunpack.c.h.b16 %v329
        %v465 = vunpack.c.l.b16 %v330
        %v466 = vunpack.c.h.b16 %v330
        %v467 = vunpack.c.l.b16 %v331
        %v468 = vunpack.c.h.b16 %v331
        %v469 = vunpack.c.l.b16 %v332
        %v470 = vunpack.c.h.b16 %v332
        %v471 = vunpack.c.l.b16 %v333
        %v472 = vunpack.c.h.b16 %v333
        %v473 = vunpack.c.l.b16 %v334
        %v474 = vunpack.c.h.b16 %v334
        %v475 = vunpack.c.l.b16 %v335
        %v476 = vunpack.c.h.b16 %v335
        %v477 = vunpack.c.l.b16 %v336
        %v478 = vunpack.c.h.b16 %v336
        %v479 = vunpack.c.l.b16 %v337
        %v480 = vunpack.c.h.b16 %v337
        %v481 = vunpack.c.l.b16 %v338
        %v482 = vunpack.c.h.b16 %v338
        %v483 = vunpack.c.l.b16 %v339
        %v484 = vunpack.c.h.b16 %v339
        %v485 = vunpack.c.l.b16 %v340
        %v486 = vunpack.c.h.b16 %v340
        %v487 = vunpack.c.l.b16 %v341
        %v488 = vunpack.c.h.b16 %v341
        %v489 = vunpack.c.l.b16 %v342
        %v490 = vunpack.c.h.b16 %v342
        %v491 = vunpack.c.l.b16 %v343
        %v492 = vunpack.c.h.b16 %v343
        %v493 = vunpack.c.l.b16 %v344
        %v494 = vunpack.c.h.b16 %v344
        %v495 = vunpack.c.l.b16 %v345
        %v496 = vunpack.c.h.b16 %v345
        %v497 = vunpack.c.l.b16 %v346
        %v498 = vunpack.c.h.b16 %v346
        %v499 = vunpack.c.l.b16 %v347
        %v500 = vunpack.c.h.b16 %v347
        %v501 = vunpack.c.l.b16 %v348
        %v502 = vunpack.c.h.b16 %v348
        %v503 = vunpack.c.l.b16 %v349
        %v504 = vunpack.c.h.b16 %v349
        %v505 = vunpack.c.l.b16 %v350
        %v506 = vunpack.c.h.b16 %v350
        %v507 = vunpack.c.l.b16 %v351
        %v508 = vunpack.c.h.b16 %v351
        %v509 = vunpack.c.l.b16 %v352
        %v510 = vunpack.c.h.b16 %v352
        %v511 = vunpack.c.l.b16 %v353
        %v512 = vunpack.c.h.b16 %v353
        %v513 = vunpack.c.l.b16 %v354
        %v514 = vunpack.c.h.b16 %v354
        %v515 = vunpack.c.l.b16 %v355
        %v516 = vunpack.c.h.b16 %v355
        %v517 = vunpack.c.l.b16 %v356
        %v518 = vunpack.c.h.b16 %v356
        %v519 = vunpack.c.l.b16 %v357
        %v520 = vunpack.c.h.b16 %v357
        %v521 = vunpack.c.l.b16 %v358
        %v522 = vunpack.c.h.b16 %v358
        %v523 = vunpack.c.l.b16 %v359
        %v524 = vunpack.c.h.b16 %v359
        %v525 = vunpack.c.l.b16 %v360
        %v526 = vunpack.c.h.b16 %v360
        %v527 = vunpack.c.l.b16 %v361
        %v528 = vunpack.c.h.b16 %v361
        %v529 = vunpack.c.l.b16 %v362
        %v530 = vunpack.c.h.b16 %v362
        %v531 = vunpack.c.l.b16 %v363
        %v532 = vunpack.c.h.b16 %v363
        %v533 = vunpack.c.l.b16 %v364
        %v534 = vunpack.c.h.b16 %v364
        %v535 = vunpack.c.l.b16 %v365
        %v536 = vunpack.c.h.b16 %v365
        %v537 = vunpack.c.l.b16 %v366
        %v538 = vunpack.c.h.b16 %v366
        %v539 = vunpack.c.l.b16 %v367
        %v540 = vunpack.c.h.b16 %v367
        %v541 = vunpack.c.l.b16 %v368
        %v542 = vunpack.c.h.b16 %v368
        %v543 = vunpack.c.l.b16 %v369
        %v544 = vunpack.c.h.b16 %v369
        %v545 = vunpack.c.l.b16 %v370
        %v546 = vunpack.c.h.b16 %v370
        %v547 = vunpack.c.l.b16 %v371
        %v548 = vunpack.c.h.b16 %v371
        %v549 = vunpack.c.l.b16 %v372
        %v550 = vunpack.c.h.b16 %v372
        %v551 = vunpack.c.l.b16 %v373
        %v552 = vunpack.c.h.b16 %v373
        %v553 = vunpack.c.l.b16 %v374
        %v554 = vunpack.c.h.b16 %v374
        %v555 = vunpack.c.l.b16 %v375
        %v556 = vunpack.c.h.b16 %v375
        %v557 = vunpack.c.l.b16 %v376
        %v558 = vunpack.c.h.b16 %v376
        %v559 = vunpack.c.l.b16 %v377
        %v560 = vunpack.c.h.b16 %v377
        %v561 = vunpack.c.l.b16 %v378
        %v562 = vunpack.c.h.b16 %v378
        %v563 = vunpack.c.l.b16 %v379
        %v564 = vunpack.c.h.b16 %v379
        %v565 = vunpack.c.l.b16 %v380
        %v566 = vunpack.c.h.b16 %v380
        %v567 = vunpack.c.l.b16 %v381
        %v568 = vunpack.c.h.b16 %v381
        %v569 = vunpack.c.l.b16 %v382
        %v570 = vunpack.c.h.b16 %v382
        %v571 = vunpack.c.l.b16 %v383
        %v572 = vunpack.c.h.b16 %v383
        %v573 = vunpack.c.l.b16 %v384
        %v574 = vunpack.c.h.b16 %v384
        %v575 = vunpack.c.l.b16 %v385
        %v576 = vunpack.c.h.b16 %v385
        %v577 = vunpack.c.l.b16 %v386
        %v578 = vunpack.c.h.b16 %v386
        %v579 = vpack.c.b16 %v455, %v451
        %v580 = vpack.c.b16 %v456, %v452
        %v581 = vpack.c.b16 %v457, %v453
        %v582 = vpack.c.b16 %v458, %v454
        %v583 = vpack.c.b16 %v463, %v459
        %v584 = vpack.c.b16 %v464, %v460
        %v585 = vpack.c.b16 %v465, %v461
        %v586 = vpack.c.b16 %v466, %v462
        %v587 = vpack.c.b16 %v471, %v467
        %v588 = vpack.c.b16 %v472, %v468
        %v589 = vpack.c.b16 %v473, %v469
        %v590 = vpack.c.b16 %v474, %v470
        %v591 = vpack.c.b16 %v479, %v475
        %v592 = vpack.c.b16 %v480, %v476
        %v593 = vpack.c.b16 %v481, %v477
        %v594 = vpack.c.b16 %v482, %v478
        %v595 = vpack.c.b16 %v487, %v483
        %v596 = vpack.c.b16 %v488, %v484
        %v597 = vpack.c.b16 %v489, %v485
        %v598 = vpack.c.b16 %v490, %v486
        %v599 = vpack.c.b16 %v495, %v491
        %v600 = vpack.c.b16 %v496, %v492
        %v601 = vpack.c.b16 %v497, %v493
        %v602 = vpack.c.b16 %v498, %v494
        %v603 = vpack.c.b16 %v503, %v499
        %v604 = vpack.c.b16 %v504, %v500
        %v605 = vpack.c.b16 %v505, %v501
        %v606 = vpack.c.b16 %v506, %v502
        %v607 = vpack.c.b16 %v511, %v507
        %v608 = vpack.c.b16 %v512, %v508
        %v609 = vpack.c.b16 %v513, %v509
        %v610 = vpack.c.b16 %v514, %v510
        %v611 = vpack.c.b16 %v519, %v515
        %v612 = vpack.c.b16 %v520, %v516
        %v613 = vpack.c.b16 %v521, %v517
        %v614 = vpack.c.b16 %v522, %v518
        %v615 = vpack.c.b16 %v527, %v523
        %v616 = vpack.c.b16 %v528, %v524
        %v617 = vpack.c.b16 %v529, %v525
        %v618 = vpack.c.b16 %v530, %v526
        %v619 = vpack.c.b16 %v535, %v531
        %v620 = vpack.c.b16 %v536, %v532
        %v621 = vpack.c.b16 %v537, %v533
        %v622 = vpack.c.b16 %v538, %v534
        %v623 = vpack.c.b16 %v543, %v539
        %v624 = vpack.c.b16 %v544, %v540
        %v625 = vpack.c.b16 %v545, %v541
        %v626 = vpack.c.b16 %v546, %v542
        %v627 = vpack.c.b16 %v551, %v547
        %v628 = vpack.c.b16 %v552, %v548
        %v629 = vpack.c.b16 %v553, %v549
        %v630 = vpack.c.b16 %v554, %v550
        %v631 = vpack.c.b16 %v559, %v555
        %v632 = vpack.c.b16 %v560, %v556
        %v633 = vpack.c.b16 %v561, %v557
        %v634 = vpack.c.b16 %v562, %v558
        %v635 = vpack.c.b16 %v567, %v563
        %v636 = vpack.c.b16 %v568, %v564
        %v637 = vpack.c.b16 %v569, %v565
        %v638 = vpack.c.b16 %v570, %v566
        %v639 = vpack.c.b16 %v575, %v571
        %v640 = vpack.c.b16 %v576, %v572
        %v641 = vpack.c.b16 %v577, %v573
        %v642 = vpack.c.b16 %v578, %v574
        %v771 = vunpack.c.l.b16 %v227
        %v772 = vunpack.c.l.b16 %v228
        %v773 = vunpack.c.l.b16 %v229
        %v774 = vunpack.c.l.b16 %v230
        %v775 = vunpack.c.l.b16 %v231
        %v776 = vunpack.c.l.b16 %v232
        %v777 = vunpack.c.l.b16 %v233
        %v778 = vunpack.c.l.b16 %v234
        %v779 = vunpack.c.l.b16 %v235
        %v780 = vunpack.c.l.b16 %v236
        %v781 = vunpack.c.l.b16 %v237
        %v782 = vunpack.c.l.b16 %v238
        %v783 = vunpack.c.l.b16 %v239
        %v784 = vunpack.c.l.b16 %v240
        %v785 = vunpack.c.l.b16 %v241
        %v786 = vunpack.c.l.b16 %v242
        %v787 = vunpack.c.l.b16 %v243
        %v788 = vunpack.c.l.b16 %v244
        %v789 = vunpack.c.l.b16 %v245
        %v790 = vunpack.c.l.b16 %v246
        %v791 = vunpack.c.l.b16 %v247
        %v792 = vunpack.c.l.b16 %v248
        %v793 = vunpack.c.l.b16 %v249
        %v794 = vunpack.c.l.b16 %v250
        %v795 = vunpack.c.l.b16 %v251
        %v796 = vunpack.c.l.b16 %v252
        %v797 = vunpack.c.l.b16 %v253
        %v798 = vunpack.c.l.b16 %v254
        %v799 = vunpack.c.l.b16 %v255
        %v800 = vunpack.c.l.b16 %v256
        %v801 = vunpack.c.l.b16 %v257
        %v802 = vunpack.c.l.b16 %v258
        %v803 = vunpack.c.l.b16 %v259
        %v804 = vunpack.c.l.b16 %v260
        %v805 = vunpack.c.l.b16 %v261
        %v806 = vunpack.c.l.b16 %v262
        %v807 = vunpack.c.l.b16 %v263
        %v808 = vunpack.c.l.b16 %v264
        %v809 = vunpack.c.l.b16 %v265
        %v810 = vunpack.c.l.b16 %v266
        %v811 = vunpack.c.l.b16 %v267
        %v812 = vunpack.c.l.b16 %v268
        %v813 = vunpack.c.l.b16 %v269
        %v814 = vunpack.c.l.b16 %v270
        %v815 = vunpack.c.l.b16 %v271
        %v816 = vunpack.c.l.b16 %v272
        %v817 = vunpack.c.l.b16 %v273
        %v818 = vunpack.c.l.b16 %v274
        %v819 = vunpack.c.l.b16 %v275
        %v820 = vunpack.c.l.b16 %v276
        %v821 = vunpack.c.l.b16 %v277
        %v822 = vunpack.c.l.b16 %v278
        %v823 = vunpack.c.l.b16 %v279
        %v824 = vunpack.c.l.b16 %v280
        %v825 = vunpack.c.l.b16 %v281
        %v826 = vunpack.c.l.b16 %v282
        %v827 = vunpack.c.l.b16 %v283
        %v828 = vunpack.c.l.b16 %v284
        %v829 = vunpack.c.l.b16 %v285
        %v830 = vunpack.c.l.b16 %v286
        %v831 = vunpack.c.l.b16 %v287
        %v832 = vunpack.c.l.b16 %v288
        %v833 = vunpack.c.l.b16 %v289
        %v834 = vunpack.c.l.b16 %v290
        %v835 = vpack.c.b16 %v772, %v771
        %v836 = vpack.c.b16 %v774, %v773
        %v837 = vpack.c.b16 %v776, %v775
        %v838 = vpack.c.b16 %v778, %v777
        %v839 = vpack.c.b16 %v780, %v779
        %v840 = vpack.c.b16 %v782, %v781
        %v841 = vpack.c.b16 %v784, %v783
        %v842 = vpack.c.b16 %v786, %v785
        %v843 = vpack.c.b16 %v788, %v787
        %v844 = vpack.c.b16 %v790, %v789
        %v845 = vpack.c.b16 %v792, %v791
        %v846 = vpack.c.b16 %v794, %v793
        %v847 = vpack.c.b16 %v796, %v795
        %v848 = vpack.c.b16 %v798, %v797
        %v849 = vpack.c.b16 %v800, %v799
        %v850 = vpack.c.b16 %v802, %v801
        %v851 = vpack.c.b16 %v804, %v803
        %v852 = vpack.c.b16 %v806, %v805
        %v853 = vpack.c.b16 %v808, %v807
        %v854 = vpack.c.b16 %v810, %v809
        %v855 = vpack.c.b16 %v812, %v811
        %v856 = vpack.c.b16 %v814, %v813
        %v857 = vpack.c.b16 %v816, %v815
        %v858 = vpack.c.b16 %v818, %v817
        %v859 = vpack.c.b16 %v820, %v819
        %v860 = vpack.c.b16 %v822, %v821
        %v861 = vpack.c.b16 %v824, %v823
        %v862 = vpack.c.b16 %v826, %v825
        %v863 = vpack.c.b16 %v828, %v827
        %v864 = vpack.c.b16 %v830, %v829
        %v865 = vpack.c.b16 %v832, %v831
        %v866 = vpack.c.b16 %v834, %v833
        %899 = vmatpush.bf16.msra.mxu0 %v842
        %900 = vmatpush.bf16.msra.mxu0 %v841
        %901 = vmatpush.bf16.msra.mxu0 %v840
        %902 = vmatpush.bf16.msra.mxu0 %v839
        %903 = vmatpush.bf16.msra.mxu0 %v838
        %904 = vmatpush.bf16.msra.mxu0 %v837
        %905 = vmatpush.bf16.msra.mxu0 %v836
        %906 = vmatpush.bf16.msra.mxu0 %v835
        %907 = vmatmul.bf16.gmra.mxu0 %v579
        %v908 = vpop.f32.mrf.mxu0
        %v909 = vadd.f32 0.0, %v908
        %v910 = vpop.f32.mrf.mxu0
        %v911 = vadd.f32 0.0, %v910
        %912 = vmatmul.bf16.gmra.mxu0 %v583
        %v913 = vpop.f32.mrf.mxu0
        %v914 = vadd.f32 0.0, %v913
        %v915 = vpop.f32.mrf.mxu0
        %v916 = vadd.f32 0.0, %v915
        %917 = vmatmul.bf16.gmra.mxu0 %v587
        %v918 = vpop.f32.mrf.mxu0
        %v919 = vadd.f32 0.0, %v918
        %v920 = vpop.f32.mrf.mxu0
        %v921 = vadd.f32 0.0, %v920
        %922 = vmatmul.bf16.gmra.mxu0 %v591
        %v923 = vpop.f32.mrf.mxu0
        %v924 = vadd.f32 0.0, %v923
        %v925 = vpop.f32.mrf.mxu0
        %v926 = vadd.f32 0.0, %v925
        %927 = vmatmul.bf16.gmra.mxu0 %v595
        %v928 = vpop.f32.mrf.mxu0
        %v929 = vadd.f32 0.0, %v928
        %v930 = vpop.f32.mrf.mxu0
        %v931 = vadd.f32 0.0, %v930
        %932 = vmatmul.bf16.gmra.mxu0 %v599
        %v933 = vpop.f32.mrf.mxu0
        %v934 = vadd.f32 0.0, %v933
        %v935 = vpop.f32.mrf.mxu0
        %v936 = vadd.f32 0.0, %v935
        %937 = vmatmul.bf16.gmra.mxu0 %v603
        %v938 = vpop.f32.mrf.mxu0
        %v939 = vadd.f32 0.0, %v938
        %v940 = vpop.f32.mrf.mxu0
        %v941 = vadd.f32 0.0, %v940
        %942 = vmatmul.bf16.gmra.mxu0 %v607
        %v943 = vpop.f32.mrf.mxu0
        %v944 = vadd.f32 0.0, %v943
        %v945 = vpop.f32.mrf.mxu0
        %v946 = vadd.f32 0.0, %v945
        %947 = vmatmul.bf16.gmra.mxu0 %v611
        %v948 = vpop.f32.mrf.mxu0
        %v949 = vadd.f32 0.0, %v948
        %v950 = vpop.f32.mrf.mxu0
        %v951 = vadd.f32 0.0, %v950
        %952 = vmatmul.bf16.gmra.mxu0 %v615
        %v953 = vpop.f32.mrf.mxu0
        %v954 = vadd.f32 0.0, %v953
        %v955 = vpop.f32.mrf.mxu0
        %v956 = vadd.f32 0.0, %v955
        %957 = vmatmul.bf16.gmra.mxu0 %v619
        %v958 = vpop.f32.mrf.mxu0
        %v959 = vadd.f32 0.0, %v958
        %v960 = vpop.f32.mrf.mxu0
        %v961 = vadd.f32 0.0, %v960
        %962 = vmatmul.bf16.gmra.mxu0 %v623
        %v963 = vpop.f32.mrf.mxu0
        %v964 = vadd.f32 0.0, %v963
        %v965 = vpop.f32.mrf.mxu0
        %v966 = vadd.f32 0.0, %v965
        %967 = vmatmul.bf16.gmra.mxu0 %v627
        %v968 = vpop.f32.mrf.mxu0
        %v969 = vadd.f32 0.0, %v968
        %v970 = vpop.f32.mrf.mxu0
        %v971 = vadd.f32 0.0, %v970
        %972 = vmatmul.bf16.gmra.mxu0 %v631
        %v973 = vpop.f32.mrf.mxu0
        %v974 = vadd.f32 0.0, %v973
        %v975 = vpop.f32.mrf.mxu0
        %v976 = vadd.f32 0.0, %v975
        %977 = vmatmul.bf16.gmra.mxu0 %v635
        %v978 = vpop.f32.mrf.mxu0
        %v979 = vadd.f32 0.0, %v978
        %v980 = vpop.f32.mrf.mxu0
        %v981 = vadd.f32 0.0, %v980
        %982 = vmatmul.bf16.gmra.mxu0 %v639
        %v983 = vpop.f32.mrf.mxu0
        %v984 = vadd.f32 0.0, %v983
        %v985 = vpop.f32.mrf.mxu0
        %v986 = vadd.f32 0.0, %v985
        %987 = vdwg.mxu0
        %988 = vmatpush.bf16.msra.mxu0 %v850
        %989 = vmatpush.bf16.msra.mxu0 %v849
        %990 = vmatpush.bf16.msra.mxu0 %v848
        %991 = vmatpush.bf16.msra.mxu0 %v847
        %992 = vmatpush.bf16.msra.mxu0 %v846
        %993 = vmatpush.bf16.msra.mxu0 %v845
        %994 = vmatpush.bf16.msra.mxu0 %v844
        %995 = vmatpush.bf16.msra.mxu0 %v843
        %996 = vmatmul.bf16.gmra.mxu0 %v580
        %v997 = vpop.f32.mrf.mxu0
        %v998 = vadd.f32 %v909, %v997
        %v999 = vpop.f32.mrf.mxu0
        %v1000 = vadd.f32 %v911, %v999
        %1001 = vmatmul.bf16.gmra.mxu0 %v584
        %v1002 = vpop.f32.mrf.mxu0
        %v1003 = vadd.f32 %v914, %v1002
        %v1004 = vpop.f32.mrf.mxu0
        %v1005 = vadd.f32 %v916, %v1004
        %1006 = vmatmul.bf16.gmra.mxu0 %v588
        %v1007 = vpop.f32.mrf.mxu0
        %v1008 = vadd.f32 %v919, %v1007
        %v1009 = vpop.f32.mrf.mxu0
        %v1010 = vadd.f32 %v921, %v1009
        %1011 = vmatmul.bf16.gmra.mxu0 %v592
        %v1012 = vpop.f32.mrf.mxu0
        %v1013 = vadd.f32 %v924, %v1012
        %v1014 = vpop.f32.mrf.mxu0
        %v1015 = vadd.f32 %v926, %v1014
        %1016 = vmatmul.bf16.gmra.mxu0 %v596
        %v1017 = vpop.f32.mrf.mxu0
        %v1018 = vadd.f32 %v929, %v1017
        %v1019 = vpop.f32.mrf.mxu0
        %v1020 = vadd.f32 %v931, %v1019
        %1021 = vmatmul.bf16.gmra.mxu0 %v600
        %v1022 = vpop.f32.mrf.mxu0
        %v1023 = vadd.f32 %v934, %v1022
        %v1024 = vpop.f32.mrf.mxu0
        %v1025 = vadd.f32 %v936, %v1024
        %1026 = vmatmul.bf16.gmra.mxu0 %v604
        %v1027 = vpop.f32.mrf.mxu0
        %v1028 = vadd.f32 %v939, %v1027
        %v1029 = vpop.f32.mrf.mxu0
        %v1030 = vadd.f32 %v941, %v1029
        %1031 = vmatmul.bf16.gmra.mxu0 %v608
        %v1032 = vpop.f32.mrf.mxu0
        %v1033 = vadd.f32 %v944, %v1032
        %v1034 = vpop.f32.mrf.mxu0
        %v1035 = vadd.f32 %v946, %v1034
        %1036 = vmatmul.bf16.gmra.mxu0 %v612
        %v1037 = vpop.f32.mrf.mxu0
        %v1038 = vadd.f32 %v949, %v1037
        %v1039 = vpop.f32.mrf.mxu0
        %v1040 = vadd.f32 %v951, %v1039
        %1041 = vmatmul.bf16.gmra.mxu0 %v616
        %v1042 = vpop.f32.mrf.mxu0
        %v1043 = vadd.f32 %v954, %v1042
        %v1044 = vpop.f32.mrf.mxu0
        %v1045 = vadd.f32 %v956, %v1044
        %1046 = vmatmul.bf16.gmra.mxu0 %v620
        %v1047 = vpop.f32.mrf.mxu0
        %v1048 = vadd.f32 %v959, %v1047
        %v1049 = vpop.f32.mrf.mxu0
        %v1050 = vadd.f32 %v961, %v1049
        %1051 = vmatmul.bf16.gmra.mxu0 %v624
        %v1052 = vpop.f32.mrf.mxu0
        %v1053 = vadd.f32 %v964, %v1052
        %v1054 = vpop.f32.mrf.mxu0
        %v1055 = vadd.f32 %v966, %v1054
        %1056 = vmatmul.bf16.gmra.mxu0 %v628
        %v1057 = vpop.f32.mrf.mxu0
        %v1058 = vadd.f32 %v969, %v1057
        %v1059 = vpop.f32.mrf.mxu0
        %v1060 = vadd.f32 %v971, %v1059
        %1061 = vmatmul.bf16.gmra.mxu0 %v632
        %v1062 = vpop.f32.mrf.mxu0
        %v1063 = vadd.f32 %v974, %v1062
        %v1064 = vpop.f32.mrf.mxu0
        %v1065 = vadd.f32 %v976, %v1064
        %1066 = vmatmul.bf16.gmra.mxu0 %v636
        %v1067 = vpop.f32.mrf.mxu0
        %v1068 = vadd.f32 %v979, %v1067
        %v1069 = vpop.f32.mrf.mxu0
        %v1070 = vadd.f32 %v981, %v1069
        %1071 = vmatmul.bf16.gmra.mxu0 %v640
        %v1072 = vpop.f32.mrf.mxu0
        %v1073 = vadd.f32 %v984, %v1072
        %v1074 = vpop.f32.mrf.mxu0
        %v1075 = vadd.f32 %v986, %v1074
        %1076 = vdwg.mxu0
        %1077 = vmatpush.bf16.msra.mxu0 %v858
        %1078 = vmatpush.bf16.msra.mxu0 %v857
        %1079 = vmatpush.bf16.msra.mxu0 %v856
        %1080 = vmatpush.bf16.msra.mxu0 %v855
        %1081 = vmatpush.bf16.msra.mxu0 %v854
        %1082 = vmatpush.bf16.msra.mxu0 %v853
        %1083 = vmatpush.bf16.msra.mxu0 %v852
        %1084 = vmatpush.bf16.msra.mxu0 %v851
        %1085 = vmatmul.bf16.gmra.mxu0 %v581
        %v1086 = vpop.f32.mrf.mxu0
        %v1087 = vadd.f32 %v998, %v1086
        %v1088 = vpop.f32.mrf.mxu0
        %v1089 = vadd.f32 %v1000, %v1088
        %1090 = vmatmul.bf16.gmra.mxu0 %v585
        %v1091 = vpop.f32.mrf.mxu0
        %v1092 = vadd.f32 %v1003, %v1091
        %v1093 = vpop.f32.mrf.mxu0
        %v1094 = vadd.f32 %v1005, %v1093
        %1095 = vmatmul.bf16.gmra.mxu0 %v589
        %v1096 = vpop.f32.mrf.mxu0
        %v1097 = vadd.f32 %v1008, %v1096
        %v1098 = vpop.f32.mrf.mxu0
        %v1099 = vadd.f32 %v1010, %v1098
        %1100 = vmatmul.bf16.gmra.mxu0 %v593
        %v1101 = vpop.f32.mrf.mxu0
        %v1102 = vadd.f32 %v1013, %v1101
        %v1103 = vpop.f32.mrf.mxu0
        %v1104 = vadd.f32 %v1015, %v1103
        %1105 = vmatmul.bf16.gmra.mxu0 %v597
        %v1106 = vpop.f32.mrf.mxu0
        %v1107 = vadd.f32 %v1018, %v1106
        %v1108 = vpop.f32.mrf.mxu0
        %v1109 = vadd.f32 %v1020, %v1108
        %1110 = vmatmul.bf16.gmra.mxu0 %v601
        %v1111 = vpop.f32.mrf.mxu0
        %v1112 = vadd.f32 %v1023, %v1111
        %v1113 = vpop.f32.mrf.mxu0
        %v1114 = vadd.f32 %v1025, %v1113
        %1115 = vmatmul.bf16.gmra.mxu0 %v605
        %v1116 = vpop.f32.mrf.mxu0
        %v1117 = vadd.f32 %v1028, %v1116
        %v1118 = vpop.f32.mrf.mxu0
        %v1119 = vadd.f32 %v1030, %v1118
        %1120 = vmatmul.bf16.gmra.mxu0 %v609
        %v1121 = vpop.f32.mrf.mxu0
        %v1122 = vadd.f32 %v1033, %v1121
        %v1123 = vpop.f32.mrf.mxu0
        %v1124 = vadd.f32 %v1035, %v1123
        %1125 = vmatmul.bf16.gmra.mxu0 %v613
        %v1126 = vpop.f32.mrf.mxu0
        %v1127 = vadd.f32 %v1038, %v1126
        %v1128 = vpop.f32.mrf.mxu0
        %v1129 = vadd.f32 %v1040, %v1128
        %1130 = vmatmul.bf16.gmra.mxu0 %v617
        %v1131 = vpop.f32.mrf.mxu0
        %v1132 = vadd.f32 %v1043, %v1131
        %v1133 = vpop.f32.mrf.mxu0
        %v1134 = vadd.f32 %v1045, %v1133
        %1135 = vmatmul.bf16.gmra.mxu0 %v621
        %v1136 = vpop.f32.mrf.mxu0
        %v1137 = vadd.f32 %v1048, %v1136
        %v1138 = vpop.f32.mrf.mxu0
        %v1139 = vadd.f32 %v1050, %v1138
        %1140 = vmatmul.bf16.gmra.mxu0 %v625
        %v1141 = vpop.f32.mrf.mxu0
        %v1142 = vadd.f32 %v1053, %v1141
        %v1143 = vpop.f32.mrf.mxu0
        %v1144 = vadd.f32 %v1055, %v1143
        %1145 = vmatmul.bf16.gmra.mxu0 %v629
        %v1146 = vpop.f32.mrf.mxu0
        %v1147 = vadd.f32 %v1058, %v1146
        %v1148 = vpop.f32.mrf.mxu0
        %v1149 = vadd.f32 %v1060, %v1148
        %1150 = vmatmul.bf16.gmra.mxu0 %v633
        %v1151 = vpop.f32.mrf.mxu0
        %v1152 = vadd.f32 %v1063, %v1151
        %v1153 = vpop.f32.mrf.mxu0
        %v1154 = vadd.f32 %v1065, %v1153
        %1155 = vmatmul.bf16.gmra.mxu0 %v637
        %v1156 = vpop.f32.mrf.mxu0
        %v1157 = vadd.f32 %v1068, %v1156
        %v1158 = vpop.f32.mrf.mxu0
        %v1159 = vadd.f32 %v1070, %v1158
        %1160 = vmatmul.bf16.gmra.mxu0 %v641
        %v1161 = vpop.f32.mrf.mxu0
        %v1162 = vadd.f32 %v1073, %v1161
        %v1163 = vpop.f32.mrf.mxu0
        %v1164 = vadd.f32 %v1075, %v1163
        %1165 = vdwg.mxu0
        %1166 = vmatpush.bf16.msra.mxu0 %v866
        %1167 = vmatpush.bf16.msra.mxu0 %v865
        %1168 = vmatpush.bf16.msra.mxu0 %v864
        %1169 = vmatpush.bf16.msra.mxu0 %v863
        %1170 = vmatpush.bf16.msra.mxu0 %v862
        %1171 = vmatpush.bf16.msra.mxu0 %v861
        %1172 = vmatpush.bf16.msra.mxu0 %v860
        %1173 = vmatpush.bf16.msra.mxu0 %v859
        %1174 = vmatmul.bf16.gmra.mxu0 %v582
        %v1175 = vpop.f32.mrf.mxu0
        %v1176 = vadd.f32 %v1087, %v1175
        %v1177 = vpop.f32.mrf.mxu0
        %v1178 = vadd.f32 %v1089, %v1177
        %1179 = vmatmul.bf16.gmra.mxu0 %v586
        %v1180 = vpop.f32.mrf.mxu0
        %v1181 = vadd.f32 %v1092, %v1180
        %v1182 = vpop.f32.mrf.mxu0
        %v1183 = vadd.f32 %v1094, %v1182
        %1184 = vmatmul.bf16.gmra.mxu0 %v590
        %v1185 = vpop.f32.mrf.mxu0
        %v1186 = vadd.f32 %v1097, %v1185
        %v1187 = vpop.f32.mrf.mxu0
        %v1188 = vadd.f32 %v1099, %v1187
        %1189 = vmatmul.bf16.gmra.mxu0 %v594
        %v1190 = vpop.f32.mrf.mxu0
        %v1191 = vadd.f32 %v1102, %v1190
        %v1192 = vpop.f32.mrf.mxu0
        %v1193 = vadd.f32 %v1104, %v1192
        %1194 = vmatmul.bf16.gmra.mxu0 %v598
        %v1195 = vpop.f32.mrf.mxu0
        %v1196 = vadd.f32 %v1107, %v1195
        %v1197 = vpop.f32.mrf.mxu0
        %v1198 = vadd.f32 %v1109, %v1197
        %1199 = vmatmul.bf16.gmra.mxu0 %v602
        %v1200 = vpop.f32.mrf.mxu0
        %v1201 = vadd.f32 %v1112, %v1200
        %v1202 = vpop.f32.mrf.mxu0
        %v1203 = vadd.f32 %v1114, %v1202
        %1204 = vmatmul.bf16.gmra.mxu0 %v606
        %v1205 = vpop.f32.mrf.mxu0
        %v1206 = vadd.f32 %v1117, %v1205
        %v1207 = vpop.f32.mrf.mxu0
        %v1208 = vadd.f32 %v1119, %v1207
        %1209 = vmatmul.bf16.gmra.mxu0 %v610
        %v1210 = vpop.f32.mrf.mxu0
        %v1211 = vadd.f32 %v1122, %v1210
        %v1212 = vpop.f32.mrf.mxu0
        %v1213 = vadd.f32 %v1124, %v1212
        %1214 = vmatmul.bf16.gmra.mxu0 %v614
        %v1215 = vpop.f32.mrf.mxu0
        %v1216 = vadd.f32 %v1127, %v1215
        %v1217 = vpop.f32.mrf.mxu0
        %v1218 = vadd.f32 %v1129, %v1217
        %1219 = vmatmul.bf16.gmra.mxu0 %v618
        %v1220 = vpop.f32.mrf.mxu0
        %v1221 = vadd.f32 %v1132, %v1220
        %v1222 = vpop.f32.mrf.mxu0
        %v1223 = vadd.f32 %v1134, %v1222
        %1224 = vmatmul.bf16.gmra.mxu0 %v622
        %v1225 = vpop.f32.mrf.mxu0
        %v1226 = vadd.f32 %v1137, %v1225
        %v1227 = vpop.f32.mrf.mxu0
        %v1228 = vadd.f32 %v1139, %v1227
        %1229 = vmatmul.bf16.gmra.mxu0 %v626
        %v1230 = vpop.f32.mrf.mxu0
        %v1231 = vadd.f32 %v1142, %v1230
        %v1232 = vpop.f32.mrf.mxu0
        %v1233 = vadd.f32 %v1144, %v1232
        %1234 = vmatmul.bf16.gmra.mxu0 %v630
        %v1235 = vpop.f32.mrf.mxu0
        %v1236 = vadd.f32 %v1147, %v1235
        %v1237 = vpop.f32.mrf.mxu0
        %v1238 = vadd.f32 %v1149, %v1237
        %1239 = vmatmul.bf16.gmra.mxu0 %v634
        %v1240 = vpop.f32.mrf.mxu0
        %v1241 = vadd.f32 %v1152, %v1240
        %v1242 = vpop.f32.mrf.mxu0
        %v1243 = vadd.f32 %v1154, %v1242
        %1244 = vmatmul.bf16.gmra.mxu0 %v638
        %v1245 = vpop.f32.mrf.mxu0
        %v1246 = vadd.f32 %v1157, %v1245
        %v1247 = vpop.f32.mrf.mxu0
        %v1248 = vadd.f32 %v1159, %v1247
        %1249 = vmatmul.bf16.gmra.mxu0 %v642
        %v1250 = vpop.f32.mrf.mxu0
        %v1251 = vadd.f32 %v1162, %v1250
        %v1252 = vpop.f32.mrf.mxu0
        %v1253 = vadd.f32 %v1164, %v1252
        %1254 = vdwg.mxu0
        %v1255 = vadd.f32 %v291, %v1176
        %v1256 = vadd.f32 %v292, %v1178
        %v1257 = vadd.f32 %v293, %v1181
        %v1258 = vadd.f32 %v294, %v1183
        %v1259 = vadd.f32 %v295, %v1186
        %v1260 = vadd.f32 %v296, %v1188
        %v1261 = vadd.f32 %v297, %v1191
        %v1262 = vadd.f32 %v298, %v1193
        %v1263 = vadd.f32 %v299, %v1196
        %v1264 = vadd.f32 %v300, %v1198
        %v1265 = vadd.f32 %v301, %v1201
        %v1266 = vadd.f32 %v302, %v1203
        %v1267 = vadd.f32 %v303, %v1206
        %v1268 = vadd.f32 %v304, %v1208
        %v1269 = vadd.f32 %v305, %v1211
        %v1270 = vadd.f32 %v306, %v1213
        %v1271 = vadd.f32 %v307, %v1216
        %v1272 = vadd.f32 %v308, %v1218
        %v1273 = vadd.f32 %v309, %v1221
        %v1274 = vadd.f32 %v310, %v1223
        %v1275 = vadd.f32 %v311, %v1226
        %v1276 = vadd.f32 %v312, %v1228
        %v1277 = vadd.f32 %v313, %v1231
        %v1278 = vadd.f32 %v314, %v1233
        %v1279 = vadd.f32 %v315, %v1236
        %v1280 = vadd.f32 %v316, %v1238
        %v1281 = vadd.f32 %v317, %v1241
        %v1282 = vadd.f32 %v318, %v1243
        %v1283 = vadd.f32 %v319, %v1246
        %v1284 = vadd.f32 %v320, %v1248
        %v1285 = vadd.f32 %v321, %v1251
        %v1286 = vadd.f32 %v322, %v1253
        %1287 = vst [vmem:[#allocation2] sm:$0xff] %v1255
        %1288 = vst [vmem:[#allocation2 + $0x8] sm:$0xff] %v1256
        %1289 = vst [vmem:[#allocation2 + $0x10] sm:$0xff] %v1257
        %1290 = vst [vmem:[#allocation2 + $0x18] sm:$0xff] %v1258
        %1291 = vst [vmem:[#allocation2 + $0x20] sm:$0xff] %v1259
        %1292 = vst [vmem:[#allocation2 + $0x28] sm:$0xff] %v1260
        %1293 = vst [vmem:[#allocation2 + $0x30] sm:$0xff] %v1261
        %1294 = vst [vmem:[#allocation2 + $0x38] sm:$0xff] %v1262
        %1295 = vst [vmem:[#allocation2 + $0x40] sm:$0xff] %v1263
        %1296 = vst [vmem:[#allocation2 + $0x48] sm:$0xff] %v1264
        %1297 = vst [vmem:[#allocation2 + $0x50] sm:$0xff] %v1265
        %1298 = vst [vmem:[#allocation2 + $0x58] sm:$0xff] %v1266
        %1299 = vst [vmem:[#allocation2 + $0x60] sm:$0xff] %v1267
        %1300 = vst [vmem:[#allocation2 + $0x68] sm:$0xff] %v1268
        %1301 = vst [vmem:[#allocation2 + $0x70] sm:$0xff] %v1269
        %1302 = vst [vmem:[#allocation2 + $0x78] sm:$0xff] %v1270
        %1303 = vst [vmem:[#allocation2 + $0x80] sm:$0xff] %v1271
        %1304 = vst [vmem:[#allocation2 + $0x88] sm:$0xff] %v1272
        %1305 = vst [vmem:[#allocation2 + $0x90] sm:$0xff] %v1273
        %1306 = vst [vmem:[#allocation2 + $0x98] sm:$0xff] %v1274
        %1307 = vst [vmem:[#allocation2 + $0xa0] sm:$0xff] %v1275
        %1308 = vst [vmem:[#allocation2 + $0xa8] sm:$0xff] %v1276
        %1309 = vst [vmem:[#allocation2 + $0xb0] sm:$0xff] %v1277
        %1310 = vst [vmem:[#allocation2 + $0xb8] sm:$0xff] %v1278
        %1311 = vst [vmem:[#allocation2 + $0xc0] sm:$0xff] %v1279
        %1312 = vst [vmem:[#allocation2 + $0xc8] sm:$0xff] %v1280
        %1313 = vst [vmem:[#allocation2 + $0xd0] sm:$0xff] %v1281
        %1314 = vst [vmem:[#allocation2 + $0xd8] sm:$0xff] %v1282
        %1315 = vst [vmem:[#allocation2 + $0xe0] sm:$0xff] %v1283
        %1316 = vst [vmem:[#allocation2 + $0xe8] sm:$0xff] %v1284
        %1317 = vst [vmem:[#allocation2 + $0xf0] sm:$0xff] %v1285
        %1318 = vst [vmem:[#allocation2 + $0xf8] sm:$0xff] %v1286
        // Predicated region
        $region37: #{gcn_net_forward.3} parent=27 // pred_check
          %p1319 = pneg %p186
        $region38: #{gcn_net_forward.3} parent=27 // pred_check_branch
          %1321 = sbr.rel (%p1319) target = $region40
        $region39: #{gcn_net_forward.3} parent=27 // pred_region
          %v1322 = vld [vmem:[#allocation2] sm:$0xff]
          %v1323 = vld [vmem:[#allocation2 + $0x8] sm:$0xff]
          %v1324 = vld [vmem:[#allocation2 + $0x10] sm:$0xff]
          %v1325 = vld [vmem:[#allocation2 + $0x18] sm:$0xff]
          %v1326 = vld [vmem:[#allocation2 + $0x20] sm:$0xff]
          %v1327 = vld [vmem:[#allocation2 + $0x28] sm:$0xff]
          %v1328 = vld [vmem:[#allocation2 + $0x30] sm:$0xff]
          %v1329 = vld [vmem:[#allocation2 + $0x38] sm:$0xff]
          %v1330 = vld [vmem:[#allocation2 + $0x40] sm:$0xff]
          %v1331 = vld [vmem:[#allocation2 + $0x48] sm:$0xff]
          %v1332 = vld [vmem:[#allocation2 + $0x50] sm:$0xff]
          %v1333 = vld [vmem:[#allocation2 + $0x58] sm:$0xff]
          %v1334 = vld [vmem:[#allocation2 + $0x60] sm:$0xff]
          %v1335 = vld [vmem:[#allocation2 + $0x68] sm:$0xff]
          %v1336 = vld [vmem:[#allocation2 + $0x70] sm:$0xff]
          %v1337 = vld [vmem:[#allocation2 + $0x78] sm:$0xff]
          %v1338 = vld [vmem:[#allocation2 + $0x80] sm:$0xff]
          %v1339 = vld [vmem:[#allocation2 + $0x88] sm:$0xff]
          %v1340 = vld [vmem:[#allocation2 + $0x90] sm:$0xff]
          %v1341 = vld [vmem:[#allocation2 + $0x98] sm:$0xff]
          %v1342 = vld [vmem:[#allocation2 + $0xa0] sm:$0xff]
          %v1343 = vld [vmem:[#allocation2 + $0xa8] sm:$0xff]
          %v1344 = vld [vmem:[#allocation2 + $0xb0] sm:$0xff]
          %v1345 = vld [vmem:[#allocation2 + $0xb8] sm:$0xff]
          %v1346 = vld [vmem:[#allocation2 + $0xc0] sm:$0xff]
          %v1347 = vld [vmem:[#allocation2 + $0xc8] sm:$0xff]
          %v1348 = vld [vmem:[#allocation2 + $0xd0] sm:$0xff]
          %v1349 = vld [vmem:[#allocation2 + $0xd8] sm:$0xff]
          %v1350 = vld [vmem:[#allocation2 + $0xe0] sm:$0xff]
          %v1351 = vld [vmem:[#allocation2 + $0xe8] sm:$0xff]
          %v1352 = vld [vmem:[#allocation2 + $0xf0] sm:$0xff]
          %v1353 = vld [vmem:[#allocation2 + $0xf8] sm:$0xff]
          %1354 = vst [vmem:[%s184] sm:$0xff] %v1322
          %1355 = vst [vmem:[%s184 + $0x8] sm:$0xff] %v1323
          %1356 = vst [vmem:[%s184 + $0x10] sm:$0xff] %v1324
          %1357 = vst [vmem:[%s184 + $0x18] sm:$0xff] %v1325
          %1358 = vst [vmem:[%s184 + $0x20] sm:$0xff] %v1326
          %1359 = vst [vmem:[%s184 + $0x28] sm:$0xff] %v1327
          %1360 = vst [vmem:[%s184 + $0x30] sm:$0xff] %v1328
          %1361 = vst [vmem:[%s184 + $0x38] sm:$0xff] %v1329
          %1362 = vst [vmem:[%s184 + $0x40] sm:$0xff] %v1330
          %1363 = vst [vmem:[%s184 + $0x48] sm:$0xff] %v1331
          %1364 = vst [vmem:[%s184 + $0x50] sm:$0xff] %v1332
          %1365 = vst [vmem:[%s184 + $0x58] sm:$0xff] %v1333
          %1366 = vst [vmem:[%s184 + $0x60] sm:$0xff] %v1334
          %1367 = vst [vmem:[%s184 + $0x68] sm:$0xff] %v1335
          %1368 = vst [vmem:[%s184 + $0x70] sm:$0xff] %v1336
          %1369 = vst [vmem:[%s184 + $0x78] sm:$0xff] %v1337
          %1370 = vst [vmem:[%s184 + $0x80] sm:$0xff] %v1338
          %1371 = vst [vmem:[%s184 + $0x88] sm:$0xff] %v1339
          %1372 = vst [vmem:[%s184 + $0x90] sm:$0xff] %v1340
          %1373 = vst [vmem:[%s184 + $0x98] sm:$0xff] %v1341
          %1374 = vst [vmem:[%s184 + $0xa0] sm:$0xff] %v1342
          %1375 = vst [vmem:[%s184 + $0xa8] sm:$0xff] %v1343
          %1376 = vst [vmem:[%s184 + $0xb0] sm:$0xff] %v1344
          %1377 = vst [vmem:[%s184 + $0xb8] sm:$0xff] %v1345
          %1378 = vst [vmem:[%s184 + $0xc0] sm:$0xff] %v1346
          %1379 = vst [vmem:[%s184 + $0xc8] sm:$0xff] %v1347
          %1380 = vst [vmem:[%s184 + $0xd0] sm:$0xff] %v1348
          %1381 = vst [vmem:[%s184 + $0xd8] sm:$0xff] %v1349
          %1382 = vst [vmem:[%s184 + $0xe0] sm:$0xff] %v1350
          %1383 = vst [vmem:[%s184 + $0xe8] sm:$0xff] %v1351
          %1384 = vst [vmem:[%s184 + $0xf0] sm:$0xff] %v1352
          %1385 = vst [vmem:[%s184 + $0xf8] sm:$0xff] %v1353
        $region40: #{gcn_net_forward.3} parent=27 // pred_fallthru
          _
        %s1386 = smul.u32 32, %s20
        %p1387 = scmp.lt.s32.totalorder %s1386, 63
        %s1388 = scalar_select %p1387, %s1386, 63
        %s1389 = smul.addr %s1388, 8
        %s1390 = scalar_lea.vmem %s2, %s1389
        // Predicated region
        $region41: #{gcn_net_forward.3} parent=27 // pred_check
          %p1391 = pneg %p95
        $region42: #{gcn_net_forward.3} parent=27 // pred_check_branch
          %1393 = sbr.rel (%p1391) target = $region44
        $region43: #{gcn_net_forward.3} parent=27 // pred_region
          %s1394 = smul.u32 32, %s20
        $region44: #{gcn_net_forward.3} parent=27 // pred_fallthru
          _
      $region28: #{gcn_net_forward.3} parent=5 // pred_fallthru
        _
      %p1395 = scmp.le.s32.totalorder 2, %s11
      // Predicated region
      $region45: #{gcn_net_forward.3} parent=5 // pred_check
        %p1396 = pneg %p1395
      $region46: #{gcn_net_forward.3} parent=5 // pred_check_branch
        %1398 = sbr.rel (%p1396) target = $region48
      $region47: #{gcn_net_forward.3} parent=5 // pred_region
        %s1399 = ssub.s32 %s11, 2
        // Predicated region
        $region49: #{gcn_net_forward.3} parent=47 // pred_check
          %p1400 = pneg %p101
        $region50: #{gcn_net_forward.3} parent=47 // pred_check_branch
          %1402 = sbr.rel (%p1400) target = $region52
        $region51: #{gcn_net_forward.3} parent=47 // pred_region
          %s1403 = smul.u32 32, %s22
          %p1404 = scmp.lt.s32.totalorder %s1403, 63
          %s1405 = scalar_select %p1404, %s1403, 63
          %s1406 = smul.addr %s1405, 8
          %s1407 = scalar_lea.vmem %s2, %s1406
        $region52: #{gcn_net_forward.3} parent=47 // pred_fallthru
          _
      $region48: #{gcn_net_forward.3} parent=5 // pred_fallthru
        _
    $region6: #{gcn_net_forward.3} parent=1 // loop_footer
      %s15 = sadd.s32 1, %s11
    $region7: #{gcn_net_forward.3} parent=1 // loop_footer_branch
      %10 = sbr.rel target = $region3
    $region8: #{gcn_net_forward.3} parent=1 // loop_exit
      _
    %1408 = vsyncpa [#allocation4], 1
    %s1409 = scalar_lea.sflag [#allocation4], 1
    %1410 = vsyncpa %s1409, 1

</llo_original>
